<compile_context>
chip_gen: v5e
topology: v5e:2x2
jax: 0.10.0
libtpu: 0.0.40
codegen_flags: <defaults>
</compile_context>

<pallas_src>
import math

import jax
import jax.numpy as jnp
import numpy as np
from jax.experimental import pallas as pl
from jax.experimental.pallas import tpu as pltpu


def _round_up(x, m):
    return (x + m - 1) // m * m


def make_beta_projection_kernel(num_layers, eps=1e-5, compute_dtype=jnp.bfloat16):
    """Kernel body.  Ref order:
         x, w0, b0, (wi_t, bi) for i in 1..L-1, w_last_t, b_last,
         (lnw_i, lnb_i) for i in 0..L-1, out
    All weights are pre-transposed in the wrapper so every matmul is a plain
    row-major `h @ w` (no in-kernel transposes)."""

    def layer_norm_relu(h, w, b):
        # Fused single-pass stats: one sum + one sum-of-squares reduction
        # instead of two dependent mean reductions.
        n = h.shape[-1]
        s = jnp.sum(h, axis=-1, keepdims=True)
        ss = jnp.sum(h * h, axis=-1, keepdims=True)
        mean = s * (1.0 / n)
        var = ss * (1.0 / n) - mean * mean
        y = (h - mean) * jax.lax.rsqrt(var + eps) * w + b
        return jnp.maximum(y, 0.0)

    def kernel(*refs):
        it = iter(refs)
        x_ref = next(it)
        w0_ref = next(it)
        b0_ref = next(it)
        hidden_wb = [(next(it), next(it)) for _ in range(num_layers - 1)]
        wl_ref = next(it)
        bl_ref = next(it)
        ln_wb = [(next(it), next(it)) for _ in range(num_layers)]
        out_ref = next(it)

        # Layer 0: x @ w0 + b0 (w0 stored (in, out)); MXU in compute_dtype with
        # f32 accumulation; LN / relu math in f32.
        h = jnp.dot(x_ref[...].astype(compute_dtype), w0_ref[...],
                    preferred_element_type=jnp.float32) + b0_ref[...]
        h = layer_norm_relu(h, ln_wb[0][0][...], ln_wb[0][1][...])

        # Hidden layers: F.linear(x, wi, bi) == x @ wi.T + bi; wi is already
        # transposed in the wrapper.
        for i in range(1, num_layers):
            wi_ref, bi_ref = hidden_wb[i - 1]
            h = jnp.dot(h.astype(compute_dtype), wi_ref[...],
                        preferred_element_type=jnp.float32) + bi_ref[...]
            h = layer_norm_relu(h, ln_wb[i][0][...], ln_wb[i][1][...])

        # Last layer (pre-transposed), then BetaE Regularizer clamp(x+1, 0.05, 1e9).
        y = jnp.dot(h.astype(compute_dtype), wl_ref[...],
                    preferred_element_type=jnp.float32) + bl_ref[...]
        out_ref[...] = jnp.clip(y + 1.0, 0.05, 1e9).astype(out_ref.dtype)

    return kernel


def build_params(key, entity_dim, relation_dim, hidden_dim, num_layers):
    """Builds the single `layers` parameter matrix exactly as the torch module
    does (norm_mode='layer', norm_param_flag=True), then splits it."""
    w_offset = entity_dim + relation_dim + (num_layers - 1) * hidden_dim + entity_dim
    num_last_bias = math.ceil(entity_dim / hidden_dim)
    total_rows = w_offset + num_layers + num_last_bias + 2 * num_layers

    nrows = ([entity_dim + relation_dim]
             + [hidden_dim] * (num_layers - 1)
             + [entity_dim]
             + [1] * num_layers
             + [num_last_bias]
             + [1] * num_layers
             + [1] * num_layers)
    assert sum(nrows) == total_rows

    layers = jnp.zeros((total_rows, hidden_dim), dtype=jnp.float32)
    # xavier_uniform_ over the first w_offset rows
    bound = math.sqrt(6.0 / (w_offset + hidden_dim))
    w_block = jax.random.uniform(key, (w_offset, hidden_dim),
                                 dtype=jnp.float32, minval=-bound, maxval=bound)
    layers = layers.at[:w_offset, :].set(w_block)
    # layer-norm weights initialized to ones
    ln_w_lo = w_offset + num_layers + num_last_bias
    layers = layers.at[ln_w_lo:ln_w_lo + num_layers, :].set(1.0)

    splits = []
    off = 0
    for n in nrows:
        splits.append(layers[off:off + n])
        off += n
    return layers, splits, nrows


def beta_projection_forward(e_emb, r_emb, splits, *, entity_dim, hidden_dim,
                            num_layers, tile_batch=256,
                            compute_dtype=jnp.bfloat16, eps=1e-5):
    bias_start = num_layers + 1
    norm_weight_start = 2 * num_layers + 2
    norm_bias_start = 3 * num_layers + 2

    x = jnp.concatenate([e_emb, r_emb], axis=-1).astype(jnp.float32)
    B, in_features = x.shape

    # ---- One-time parameter plumbing (outside the kernel / grid loop) -------
    # Pre-transpose torch-layout weights so the kernel only does h @ w, and
    # cast matmul operands to compute_dtype (bf16 -> half the weight HBM/VMEM).
    w0 = splits[0].astype(compute_dtype)                                   # (E+R, H)
    b0 = splits[bias_start].reshape(1, -1).astype(jnp.float32)             # (1, H)
    hidden_params = []
    for i in range(1, num_layers):
        hidden_params.append(jnp.transpose(splits[i]).astype(compute_dtype))          # (H, H)
        hidden_params.append(splits[bias_start + i].reshape(1, -1).astype(jnp.float32))
    w_last_t = jnp.transpose(splits[num_layers]).astype(compute_dtype)     # (H, E)
    b_last = splits[-1].reshape(-1)                                        # torch uses params[-1]
    if b_last.shape[0] != entity_dim:
        b_last = b_last[:entity_dim]
    b_last = b_last.reshape(1, -1).astype(jnp.float32)                     # (1, E)
    ln_params = []
    for i in range(num_layers):
        ln_params.append(splits[norm_weight_start + i].reshape(1, -1).astype(jnp.float32))
        ln_params.append(splits[norm_bias_start + i].reshape(1, -1).astype(jnp.float32))

    params = [w0, b0, *hidden_params, w_last_t, b_last, *ln_params]

    # ---- Batch tiling: Pallas double-buffers the x/out DMAs across the grid
    # while the parameters (constant index_map) stay resident in VMEM. --------
    TB = max(8, min(tile_batch, _round_up(B, 8)))
    TB = _round_up(TB, 8)                    # sublane rule for the tiled x/out blocks
    B_pad = _round_up(B, TB)
    x_in = x.astype(compute_dtype)
    if B_pad != B:
        x_in = jnp.pad(x_in, ((0, B_pad - B), (0, 0)))
    grid = (B_pad // TB,)

    # ---- Explicit VMEM budget: resident params (x2 pipeline buffers) +
    # double-buffered I/O tiles + activation headroom, clamped for v7x (64 MiB).
    param_bytes = sum(int(np.prod(p.shape)) * p.dtype.itemsize for p in params)
    io_bytes = 2 * TB * (in_features * x_in.dtype.itemsize + entity_dim * 4)
    act_bytes = 8 * TB * max(in_features, hidden_dim, entity_dim) * 4
    vmem_limit = int(min(max(2 * param_bytes + io_bytes + act_bytes, 16 << 20), 60 << 20))

    kernel = make_beta_projection_kernel(num_layers, eps=eps, compute_dtype=compute_dtype)
    out = pl.pallas_call(
        kernel,
        out_shape=jax.ShapeDtypeStruct((B_pad, entity_dim), jnp.float32),
        grid=grid,
        in_specs=[pl.BlockSpec((TB, in_features), lambda i: (i, 0))]
                 + [pl.BlockSpec(p.shape, lambda i: (0, 0)) for p in params],
        out_specs=pl.BlockSpec((TB, entity_dim), lambda i: (i, 0)),
        compiler_params=pltpu.CompilerParams(
            # independent batch tiles -> megacore split on v7x, harmless elsewhere
            dimension_semantics=("parallel",),
            vmem_limit_bytes=vmem_limit),
    )(x_in, *params)
    return out[:B]


def beta_projection_reference(e_emb, r_emb, splits, *, entity_dim, hidden_dim,
                              num_layers, eps=1e-5):
    """Pure-JAX f32 reference mirroring the torch forward
    (norm_mode='layer', norm_param_flag=True)."""
    bias_start = num_layers + 1
    norm_weight_start = 2 * num_layers + 2
    norm_bias_start = 3 * num_layers + 2
    hi = jax.lax.Precision.HIGHEST

    def ln(h, w, b):
        m = jnp.mean(h, axis=-1, keepdims=True)
        v = jnp.mean((h - m) ** 2, axis=-1, keepdims=True)
        return (h - m) / jnp.sqrt(v + eps) * w + b

    x = jnp.concatenate([e_emb, r_emb], axis=-1)
    w0 = splits[0]
    b0 = splits[bias_start].reshape(-1)
    x = jnp.maximum(ln(jnp.dot(x, w0, precision=hi) + b0,
                       splits[norm_weight_start].reshape(-1),
                       splits[norm_bias_start].reshape(-1)), 0.0)
    for i in range(1, num_layers):
        wi = splits[i]
        bi = splits[bias_start + i].reshape(-1)
        x = jnp.maximum(ln(jnp.dot(x, wi.T, precision=hi) + bi,
                           splits[norm_weight_start + i].reshape(-1),
                           splits[norm_bias_start + i].reshape(-1)), 0.0)
    w_last = splits[num_layers]
    b_last = splits[-1].reshape(-1)[:entity_dim]
    x = jnp.dot(x, w_last.T, precision=hi) + b_last
    return jnp.clip(x + 1.0, 0.05, 1e9)


if __name__ == "__main__":
    # Lane-dense (multiple-of-128) feature dims; batch tiled into 128-row blocks.
    entity_dim = 128
    relation_dim = 128
    hidden_dim = 128
    num_layers = 2
    batch = 256
    tile_batch = 128

    key = jax.random.PRNGKey(0)
    k_w, k_e, k_r = jax.random.split(key, 3)

    _, splits, _ = build_params(k_w, entity_dim, relation_dim, hidden_dim, num_layers)
    e_emb = jax.random.normal(k_e, (batch, entity_dim), dtype=jnp.float32)
    r_emb = jax.random.normal(k_r, (batch, relation_dim), dtype=jnp.float32)

    ref = beta_projection_reference(e_emb, r_emb, splits,
                                    entity_dim=entity_dim, hidden_dim=hidden_dim,
                                    num_layers=num_layers)
    ref = np.asarray(jax.block_until_ready(ref))

    # f32 path (tight check against the f32 reference)
    out_f32 = beta_projection_forward(e_emb, r_emb, splits,
                                      entity_dim=entity_dim, hidden_dim=hidden_dim,
                                      num_layers=num_layers, tile_batch=tile_batch,
                                      compute_dtype=jnp.float32)
    out_f32 = np.asarray(jax.block_until_ready(out_f32))
    np.testing.assert_allclose(out_f32, ref, rtol=5e-4, atol=5e-4)

    # bf16 MXU path (default; looser tolerance vs. the f32 reference)
    out_bf16 = beta_projection_forward(e_emb, r_emb, splits,
                                       entity_dim=entity_dim, hidden_dim=hidden_dim,
                                       num_layers=num_layers, tile_batch=tile_batch,
                                       compute_dtype=jnp.bfloat16)
    out_bf16 = np.asarray(jax.block_until_ready(out_bf16))
    np.testing.assert_allclose(out_bf16, ref, rtol=1e-1, atol=1e-1)

    # TODO(synk): norm_mode='batch' / 'None' and norm_param_flag=False branches
    # of the torch module are not implemented (only the 'layer' + affine path).
    print("KERNEL_OK")
</pallas_src>

<mosaic_0001>
module attributes {stable_mosaic.version = 11 : i64} {
  func.func @kernel(%arg0: i32, %arg1: memref<128x256xf32, #tpu.memory_space<vmem>>, %arg2: memref<256x128xf32, #tpu.memory_space<vmem>>, %arg3: memref<1x128xf32, #tpu.memory_space<vmem>>, %arg4: memref<128x128xf32, #tpu.memory_space<vmem>>, %arg5: memref<1x128xf32, #tpu.memory_space<vmem>>, %arg6: memref<128x128xf32, #tpu.memory_space<vmem>>, %arg7: memref<1x128xf32, #tpu.memory_space<vmem>>, %arg8: memref<1x128xf32, #tpu.memory_space<vmem>>, %arg9: memref<1x128xf32, #tpu.memory_space<vmem>>, %arg10: memref<1x128xf32, #tpu.memory_space<vmem>>, %arg11: memref<1x128xf32, #tpu.memory_space<vmem>>, %arg12: memref<128x128xf32, #tpu.memory_space<vmem>>) attributes {dimension_semantics = [#tpu.dimension_semantics<parallel>], iteration_bounds = array<i64: 2>, scalar_prefetch = 0 : i64, scratch_operands = 0 : i64, tpu.core_type = #tpu.core_type<tc>, window_params = [{transform_indices = @transform_0, window_bounds = array<i64: 128, 256>}, {pipeline_mode = #tpu.pipeline_mode<synchronous>, transform_indices = @transform_1, window_bounds = array<i64: 256, 128>}, {pipeline_mode = #tpu.pipeline_mode<synchronous>, transform_indices = @transform_2, window_bounds = array<i64: 1, 128>}, {pipeline_mode = #tpu.pipeline_mode<synchronous>, transform_indices = @transform_3, window_bounds = array<i64: 128, 128>}, {pipeline_mode = #tpu.pipeline_mode<synchronous>, transform_indices = @transform_4, window_bounds = array<i64: 1, 128>}, {pipeline_mode = #tpu.pipeline_mode<synchronous>, transform_indices = @transform_5, window_bounds = array<i64: 128, 128>}, {pipeline_mode = #tpu.pipeline_mode<synchronous>, transform_indices = @transform_6, window_bounds = array<i64: 1, 128>}, {pipeline_mode = #tpu.pipeline_mode<synchronous>, transform_indices = @transform_7, window_bounds = array<i64: 1, 128>}, {pipeline_mode = #tpu.pipeline_mode<synchronous>, transform_indices = @transform_8, window_bounds = array<i64: 1, 128>}, {pipeline_mode = #tpu.pipeline_mode<synchronous>, transform_indices = @transform_9, window_bounds = array<i64: 1, 128>}, {pipeline_mode = #tpu.pipeline_mode<synchronous>, transform_indices = @transform_10, window_bounds = array<i64: 1, 128>}, {transform_indices = @transform_11, window_bounds = array<i64: 128, 128>}]} {
    %c0 = arith.constant 0 : index
    %c0_0 = arith.constant 0 : index
    %0 = vector.load %arg1[%c0, %c0_0] : memref<128x256xf32, #tpu.memory_space<vmem>>, vector<128x256xf32>
    %c0_1 = arith.constant 0 : index
    %c0_2 = arith.constant 0 : index
    %1 = vector.load %arg2[%c0_1, %c0_2] : memref<256x128xf32, #tpu.memory_space<vmem>>, vector<256x128xf32>
    %cst = arith.constant dense<0.000000e+00> : vector<128x128xf32>
    %2 = tpu.matmul %0, %1, %cst {dimension_numbers = #tpu.dot_dimension_numbers<[1], [0], [0], [1], [0, 0, 1, 1], [], []>} : vector<128x256xf32>, vector<256x128xf32>, vector<128x128xf32> -> vector<128x128xf32>
    %c0_3 = arith.constant 0 : index
    %c0_4 = arith.constant 0 : index
    %3 = vector.load %arg3[%c0_3, %c0_4] : memref<1x128xf32, #tpu.memory_space<vmem>>, vector<1x128xf32>
    %4 = vector.broadcast %3 : vector<1x128xf32> to vector<128x128xf32>
    %5 = arith.addf %2, %4 : vector<128x128xf32>
    %c0_5 = arith.constant 0 : index
    %c0_6 = arith.constant 0 : index
    %6 = vector.load %arg8[%c0_5, %c0_6] : memref<1x128xf32, #tpu.memory_space<vmem>>, vector<1x128xf32>
    %c0_7 = arith.constant 0 : index
    %c0_8 = arith.constant 0 : index
    %7 = vector.load %arg9[%c0_7, %c0_8] : memref<1x128xf32, #tpu.memory_space<vmem>>, vector<1x128xf32>
    %cst_9 = arith.constant dense<0.000000e+00> : vector<128xf32>
    %8 = vector.multi_reduction <add>, %5, %cst_9 [1] : vector<128x128xf32> to vector<128xf32>
    %9 = vector.shape_cast %8 : vector<128xf32> to vector<128x1xf32>
    %10 = arith.mulf %5, %5 : vector<128x128xf32>
    %cst_10 = arith.constant dense<0.000000e+00> : vector<128xf32>
    %11 = vector.multi_reduction <add>, %10, %cst_10 [1] : vector<128x128xf32> to vector<128xf32>
    %12 = vector.shape_cast %11 : vector<128xf32> to vector<128x1xf32>
    %cst_11 = arith.constant 7.812500e-03 : f32
    %13 = vector.broadcast %cst_11 : f32 to vector<128x1xf32>
    %14 = arith.mulf %9, %13 : vector<128x1xf32>
    %cst_12 = arith.constant 7.812500e-03 : f32
    %15 = vector.broadcast %cst_12 : f32 to vector<128x1xf32>
    %16 = arith.mulf %12, %15 : vector<128x1xf32>
    %17 = arith.mulf %14, %14 : vector<128x1xf32>
    %18 = arith.subf %16, %17 : vector<128x1xf32>
    %19 = vector.broadcast %14 : vector<128x1xf32> to vector<128x128xf32>
    %20 = arith.subf %5, %19 : vector<128x128xf32>
    %cst_13 = arith.constant 9.99999974E-6 : f32
    %21 = vector.broadcast %cst_13 : f32 to vector<128x1xf32>
    %22 = arith.addf %18, %21 : vector<128x1xf32>
    %23 = math.rsqrt %22 : vector<128x1xf32>
    %24 = vector.broadcast %23 : vector<128x1xf32> to vector<128x128xf32>
    %25 = arith.mulf %20, %24 : vector<128x128xf32>
    %26 = vector.broadcast %6 : vector<1x128xf32> to vector<128x128xf32>
    %27 = arith.mulf %25, %26 : vector<128x128xf32>
    %28 = vector.broadcast %7 : vector<1x128xf32> to vector<128x128xf32>
    %29 = arith.addf %27, %28 : vector<128x128xf32>
    %cst_14 = arith.constant 0.000000e+00 : f32
    %30 = vector.broadcast %cst_14 : f32 to vector<128x128xf32>
    %31 = arith.maximumf %29, %30 : vector<128x128xf32>
    %c0_15 = arith.constant 0 : index
    %c0_16 = arith.constant 0 : index
    %32 = vector.load %arg4[%c0_15, %c0_16] : memref<128x128xf32, #tpu.memory_space<vmem>>, vector<128x128xf32>
    %cst_17 = arith.constant dense<0.000000e+00> : vector<128x128xf32>
    %33 = tpu.matmul %31, %32, %cst_17 {dimension_numbers = #tpu.dot_dimension_numbers<[1], [0], [0], [1], [0, 0, 1, 1], [], []>} : vector<128x128xf32>, vector<128x128xf32>, vector<128x128xf32> -> vector<128x128xf32>
    %c0_18 = arith.constant 0 : index
    %c0_19 = arith.constant 0 : index
    %34 = vector.load %arg5[%c0_18, %c0_19] : memref<1x128xf32, #tpu.memory_space<vmem>>, vector<1x128xf32>
    %35 = vector.broadcast %34 : vector<1x128xf32> to vector<128x128xf32>
    %36 = arith.addf %33, %35 : vector<128x128xf32>
    %c0_20 = arith.constant 0 : index
    %c0_21 = arith.constant 0 : index
    %37 = vector.load %arg10[%c0_20, %c0_21] : memref<1x128xf32, #tpu.memory_space<vmem>>, vector<1x128xf32>
    %c0_22 = arith.constant 0 : index
    %c0_23 = arith.constant 0 : index
    %38 = vector.load %arg11[%c0_22, %c0_23] : memref<1x128xf32, #tpu.memory_space<vmem>>, vector<1x128xf32>
    %cst_24 = arith.constant dense<0.000000e+00> : vector<128xf32>
    %39 = vector.multi_reduction <add>, %36, %cst_24 [1] : vector<128x128xf32> to vector<128xf32>
    %40 = vector.shape_cast %39 : vector<128xf32> to vector<128x1xf32>
    %41 = arith.mulf %36, %36 : vector<128x128xf32>
    %cst_25 = arith.constant dense<0.000000e+00> : vector<128xf32>
    %42 = vector.multi_reduction <add>, %41, %cst_25 [1] : vector<128x128xf32> to vector<128xf32>
    %43 = vector.shape_cast %42 : vector<128xf32> to vector<128x1xf32>
    %cst_26 = arith.constant 7.812500e-03 : f32
    %44 = vector.broadcast %cst_26 : f32 to vector<128x1xf32>
    %45 = arith.mulf %40, %44 : vector<128x1xf32>
    %cst_27 = arith.constant 7.812500e-03 : f32
    %46 = vector.broadcast %cst_27 : f32 to vector<128x1xf32>
    %47 = arith.mulf %43, %46 : vector<128x1xf32>
    %48 = arith.mulf %45, %45 : vector<128x1xf32>
    %49 = arith.subf %47, %48 : vector<128x1xf32>
    %50 = vector.broadcast %45 : vector<128x1xf32> to vector<128x128xf32>
    %51 = arith.subf %36, %50 : vector<128x128xf32>
    %cst_28 = arith.constant 9.99999974E-6 : f32
    %52 = vector.broadcast %cst_28 : f32 to vector<128x1xf32>
    %53 = arith.addf %49, %52 : vector<128x1xf32>
    %54 = math.rsqrt %53 : vector<128x1xf32>
    %55 = vector.broadcast %54 : vector<128x1xf32> to vector<128x128xf32>
    %56 = arith.mulf %51, %55 : vector<128x128xf32>
    %57 = vector.broadcast %37 : vector<1x128xf32> to vector<128x128xf32>
    %58 = arith.mulf %56, %57 : vector<128x128xf32>
    %59 = vector.broadcast %38 : vector<1x128xf32> to vector<128x128xf32>
    %60 = arith.addf %58, %59 : vector<128x128xf32>
    %cst_29 = arith.constant 0.000000e+00 : f32
    %61 = vector.broadcast %cst_29 : f32 to vector<128x128xf32>
    %62 = arith.maximumf %60, %61 : vector<128x128xf32>
    %c0_30 = arith.constant 0 : index
    %c0_31 = arith.constant 0 : index
    %63 = vector.load %arg6[%c0_30, %c0_31] : memref<128x128xf32, #tpu.memory_space<vmem>>, vector<128x128xf32>
    %cst_32 = arith.constant dense<0.000000e+00> : vector<128x128xf32>
    %64 = tpu.matmul %62, %63, %cst_32 {dimension_numbers = #tpu.dot_dimension_numbers<[1], [0], [0], [1], [0, 0, 1, 1], [], []>} : vector<128x128xf32>, vector<128x128xf32>, vector<128x128xf32> -> vector<128x128xf32>
    %c0_33 = arith.constant 0 : index
    %c0_34 = arith.constant 0 : index
    %65 = vector.load %arg7[%c0_33, %c0_34] : memref<1x128xf32, #tpu.memory_space<vmem>>, vector<1x128xf32>
    %66 = vector.broadcast %65 : vector<1x128xf32> to vector<128x128xf32>
    %67 = arith.addf %64, %66 : vector<128x128xf32>
    %cst_35 = arith.constant 1.000000e+00 : f32
    %68 = vector.broadcast %cst_35 : f32 to vector<128x128xf32>
    %69 = arith.addf %67, %68 : vector<128x128xf32>
    %cst_36 = arith.constant 5.000000e-02 : f32
    %cst_37 = arith.constant 1.000000e+09 : f32
    %70 = vector.broadcast %cst_36 : f32 to vector<128x128xf32>
    %71 = arith.maximumf %70, %69 : vector<128x128xf32>
    %72 = vector.broadcast %cst_37 : f32 to vector<128x128xf32>
    %73 = arith.minimumf %72, %71 : vector<128x128xf32>
    %c0_38 = arith.constant 0 : index
    %c0_39 = arith.constant 0 : index
    %74 = vector.load %arg12[%c0_38, %c0_39] : memref<128x128xf32, #tpu.memory_space<vmem>>, vector<128x128xf32>
    tpu.vector_store %arg12[%c0_38, %c0_39], %73 {strides = array<i32>} : memref<128x128xf32, #tpu.memory_space<vmem>>, vector<128x128xf32>,
    return
  }
  func.func @transform_0(%arg0: i32) -> (i32, i32) {
    %c0_i32 = arith.constant 0 : i32
    %c0_i32_0 = arith.constant 0 : i32
    return %arg0, %c0_i32 : i32, i32
  }
  func.func @transform_1(%arg0: i32) -> (i32, i32) {
    %c0_i32 = arith.constant 0 : i32
    %c0_i32_0 = arith.constant 0 : i32
    %c0_i32_1 = arith.constant 0 : i32
    return %c0_i32, %c0_i32_0 : i32, i32
  }
  func.func @transform_2(%arg0: i32) -> (i32, i32) {
    %c0_i32 = arith.constant 0 : i32
    %c0_i32_0 = arith.constant 0 : i32
    %c0_i32_1 = arith.constant 0 : i32
    return %c0_i32, %c0_i32_0 : i32, i32
  }
  func.func @transform_3(%arg0: i32) -> (i32, i32) {
    %c0_i32 = arith.constant 0 : i32
    %c0_i32_0 = arith.constant 0 : i32
    %c0_i32_1 = arith.constant 0 : i32
    return %c0_i32, %c0_i32_0 : i32, i32
  }
  func.func @transform_4(%arg0: i32) -> (i32, i32) {
    %c0_i32 = arith.constant 0 : i32
    %c0_i32_0 = arith.constant 0 : i32
    %c0_i32_1 = arith.constant 0 : i32
    return %c0_i32, %c0_i32_0 : i32, i32
  }
  func.func @transform_5(%arg0: i32) -> (i32, i32) {
    %c0_i32 = arith.constant 0 : i32
    %c0_i32_0 = arith.constant 0 : i32
    %c0_i32_1 = arith.constant 0 : i32
    return %c0_i32, %c0_i32_0 : i32, i32
  }
  func.func @transform_6(%arg0: i32) -> (i32, i32) {
    %c0_i32 = arith.constant 0 : i32
    %c0_i32_0 = arith.constant 0 : i32
    %c0_i32_1 = arith.constant 0 : i32
    return %c0_i32, %c0_i32_0 : i32, i32
  }
  func.func @transform_7(%arg0: i32) -> (i32, i32) {
    %c0_i32 = arith.constant 0 : i32
    %c0_i32_0 = arith.constant 0 : i32
    %c0_i32_1 = arith.constant 0 : i32
    return %c0_i32, %c0_i32_0 : i32, i32
  }
  func.func @transform_8(%arg0: i32) -> (i32, i32) {
    %c0_i32 = arith.constant 0 : i32
    %c0_i32_0 = arith.constant 0 : i32
    %c0_i32_1 = arith.constant 0 : i32
    return %c0_i32, %c0_i32_0 : i32, i32
  }
  func.func @transform_9(%arg0: i32) -> (i32, i32) {
    %c0_i32 = arith.constant 0 : i32
    %c0_i32_0 = arith.constant 0 : i32
    %c0_i32_1 = arith.constant 0 : i32
    return %c0_i32, %c0_i32_0 : i32, i32
  }
  func.func @transform_10(%arg0: i32) -> (i32, i32) {
    %c0_i32 = arith.constant 0 : i32
    %c0_i32_0 = arith.constant 0 : i32
    %c0_i32_1 = arith.constant 0 : i32
    return %c0_i32, %c0_i32_0 : i32, i32
  }
  func.func @transform_11(%arg0: i32) -> (i32, i32) {
    %c0_i32 = arith.constant 0 : i32
    %c0_i32_0 = arith.constant 0 : i32
    return %arg0, %c0_i32 : i32, i32
  }
}

</mosaic_0001>

<llo_original>
// kernel: tpu_custom_call.1
$region0: #{tpu_custom_call.1}
  #allocation0 [shape = 'u32[]', space=smem, size = 0x4, offset = 0x4, fixed_abs, tag = 'smem constant byte address 0x4 - core index']
  #allocation1 [shape = 'u32[72,128]{1,0:T(1,128)}', space=vmem, size = 0x9000, scoped, tag = 'internal scratch']
  %s0 = inlined_call_operand.hbm [shape: f32[256,256], index: 0, kind: input, shape index: {}]
  %s1 = inlined_call_operand.hbm [shape: f32[256,128], index: 1, kind: input, shape index: {}]
  %s2 = inlined_call_operand.vmem [shape: f32[1,128], index: 2, kind: input, shape index: {}]
  %s3 = inlined_call_operand.hbm [shape: f32[128,128], index: 3, kind: input, shape index: {}]
  %s4 = inlined_call_operand.vmem [shape: f32[1,128], index: 4, kind: input, shape index: {}]
  %s5 = inlined_call_operand.hbm [shape: f32[128,128], index: 5, kind: input, shape index: {}]
  %s6 = inlined_call_operand.vmem [shape: f32[1,128], index: 6, kind: input, shape index: {}]
  %s7 = inlined_call_operand.vmem [shape: f32[1,128], index: 7, kind: input, shape index: {}]
  %s8 = inlined_call_operand.vmem [shape: f32[1,128], index: 8, kind: input, shape index: {}]
  %s9 = inlined_call_operand.vmem [shape: f32[1,128], index: 9, kind: input, shape index: {}]
  %s10 = inlined_call_operand.vmem [shape: f32[1,128], index: 10, kind: input, shape index: {}]
  %s11 = inlined_call_operand.hbm [shape: f32[256,128], index: 11, kind: output, shape index: {}]
  %s12 = sld [smem:[#allocation0]]
  $region93: #{tpu_custom_call.1} parent=0
    _
  %s14 = ssub.s32 1, %s12
  %s15 = scalar_select 0, %s14, %s12
  $region1: #{tpu_custom_call.1} parent=0
    #allocation2 [shape = 'u8[262144]{0}', space=vmem, size = 0x40000, scoped, tag = 'input window, operand 0']
    #allocation3 [shape = 's32[2]{0}', space=sflag, size = 0x8, scoped, tag = 'scoped memory for tpu_custom_call.1']
    #allocation4 [shape = 's32[2]{0}', space=sflag, size = 0x8, scoped, tag = 'scoped memory for tpu_custom_call.1']
    #allocation5 [shape = 'u8[131072]{0}', space=vmem, size = 0x20000, scoped, tag = 'input window, operand 1, single buffered']
    #allocation6 [shape = 's32[1]{0}', space=sflag, size = 0x4, scoped, tag = 'scoped memory for tpu_custom_call.1']
    #allocation7 [shape = 'u8[65536]{0}', space=vmem, size = 0x10000, scoped, tag = 'input window, operand 3, single buffered']
    #allocation8 [shape = 'u8[65536]{0}', space=vmem, size = 0x10000, scoped, tag = 'input window, operand 5, single buffered']
    #allocation9 [shape = 's32[1]{0}', space=sflag, size = 0x4, scoped, tag = 'scoped memory for tpu_custom_call.1']
    #allocation10 [shape = 'u8[131072]{0}', space=vmem, size = 0x20000, scoped, tag = 'output window, operand 0']
    %16 = vsyncpa [#allocation3], 0
    %s17 = scalar_lea.sflag [#allocation3], 1
    %18 = vsyncpa %s17, 0
    %19 = vsyncpa [#allocation6], 0
    %20 = vsyncpa [#allocation9], 0
    %21 = vsyncpa [#allocation4], 0
    %s22 = scalar_lea.sflag [#allocation4], 1
    %23 = vsyncpa %s22, 0
    loop: start=0, step=1, limit=4
    $region2: #{tpu_custom_call.1} parent=1 // loop_pre_header
      _
    $region3: #{tpu_custom_call.1} parent=1 // loop_header
      %s25 = sphi 0, %s29
      %p26 = scmp.ge.s32.totalorder %s25, 4
      %s35 = sphi 0, %s37
      %s38 = sphi 0, %s35
      %s39 = sphi 0, %s38
      %s55 = sphi 0, %s39
      %s59 = sphi 0, %s59
      %s61 = sphi 0, %s59
      %s62 = sphi 0, %s61
      %s76 = sphi 0, %s62
      %s80 = sphi 0, %s80
      %s82 = sphi 0, %s80
      %s83 = sphi 0, %s82
      %s97 = sphi 0, %s83
      %s101 = sphi 0, %s101
      %s103 = sphi 0, %s101
      %s104 = sphi 0, %s103
      %s118 = sphi 0, %s104
      %s122 = sphi 0, %s122
      %s124 = sphi 0, %s122
      %s125 = sphi 0, %s124
      %s139 = sphi 0, %s125
      %s143 = sphi 0, %s143
      %s145 = sphi 0, %s143
      %s146 = sphi 0, %s145
      %s160 = sphi 0, %s146
      %s164 = sphi 0, %s164
      %s166 = sphi 0, %s164
      %s167 = sphi 0, %s166
      %s181 = sphi 0, %s167
      %s185 = sphi 0, %s185
      %s187 = sphi 0, %s185
      %s188 = sphi 0, %s187
      %s202 = sphi 0, %s188
      %s206 = sphi 0, %s206
      %s208 = sphi 0, %s206
      %s209 = sphi 0, %s208
      %s223 = sphi 0, %s209
      %s227 = sphi 0, %s227
      %s229 = sphi 0, %s227
      %s230 = sphi 0, %s229
      %s244 = sphi 0, %s230
      %s248 = sphi 0, %s248
      %s250 = sphi 0, %s248
      %s251 = sphi 0, %s250
      %s265 = sphi 0, %s251
      %s271 = sphi 0, %s273
      %s274 = sphi 0, %s271
      %s275 = sphi 0, %s274
      %s291 = sphi 0, %s275
    $region4: #{tpu_custom_call.1} parent=1 // loop_header_branch
      %28 = sbr.rel (%p26) target = $region8
    $region5: #{tpu_custom_call.1} parent=1 // loop_body
      %s30 = ssub.s32 %s25, 1
      %s31 = ssub.s32 %s25, 2
      %s32 = sadd.s32 %s25, 1
      %s33 = ssub.s32 %s25, %s32
      %p34 = scmp.eq.s32.totalorder %s33, 0
      %s36 = sadd.s32 %s35, 1
      %s37 = scalar_select %p34, %s35, %s36
      %p40 = pneg %p34
      %p41 = scmp.eq.s32.totalorder %s25, 1
      %p42 = por %p40, %p41
      %p43 = scmp.ne.s32.totalorder %s35, %s38
      %p44 = scmp.eq.s32.totalorder %s25, 0
      %p45 = por %p43, %p44
      %p46 = scmp.ne.s32.totalorder %s35, %s38
      %p47 = scmp.eq.s32.totalorder %s30, 1
      %p48 = por %p46, %p47
      %p49 = scmp.ne.s32.totalorder %s38, %s39
      %p50 = scmp.eq.s32.totalorder %s30, 0
      %p51 = por %p49, %p50
      %p52 = scmp.ne.s32.totalorder %s38, %s39
      %p53 = scmp.eq.s32.totalorder %s31, 1
      %p54 = por %p52, %p53
      %p56 = scmp.ne.s32.totalorder %s39, %s55
      %p57 = scmp.eq.s32.totalorder %s31, 0
      %p58 = por %p56, %p57
      %s60 = sadd.s32 %s59, 1
      %p63 = scmp.eq.s32.totalorder %s25, 1
      %p64 = scmp.ne.s32.totalorder %s59, %s61
      %p65 = scmp.eq.s32.totalorder %s25, 0
      %p66 = por %p64, %p65
      %p67 = scmp.ne.s32.totalorder %s59, %s61
      %p68 = scmp.eq.s32.totalorder %s30, 1
      %p69 = por %p67, %p68
      %p70 = scmp.ne.s32.totalorder %s61, %s62
      %p71 = scmp.eq.s32.totalorder %s30, 0
      %p72 = por %p70, %p71
      %p73 = scmp.ne.s32.totalorder %s61, %s62
      %p74 = scmp.eq.s32.totalorder %s31, 1
      %p75 = por %p73, %p74
      %p77 = scmp.ne.s32.totalorder %s62, %s76
      %p78 = scmp.eq.s32.totalorder %s31, 0
      %p79 = por %p77, %p78
      %s81 = sadd.s32 %s80, 1
      %p84 = scmp.eq.s32.totalorder %s25, 1
      %p85 = scmp.ne.s32.totalorder %s80, %s82
      %p86 = scmp.eq.s32.totalorder %s25, 0
      %p87 = por %p85, %p86
      %p88 = scmp.ne.s32.totalorder %s80, %s82
      %p89 = scmp.eq.s32.totalorder %s30, 1
      %p90 = por %p88, %p89
      %p91 = scmp.ne.s32.totalorder %s82, %s83
      %p92 = scmp.eq.s32.totalorder %s30, 0
      %p93 = por %p91, %p92
      %p94 = scmp.ne.s32.totalorder %s82, %s83
      %p95 = scmp.eq.s32.totalorder %s31, 1
      %p96 = por %p94, %p95
      %p98 = scmp.ne.s32.totalorder %s83, %s97
      %p99 = scmp.eq.s32.totalorder %s31, 0
      %p100 = por %p98, %p99
      %s102 = sadd.s32 %s101, 1
      %p105 = scmp.eq.s32.totalorder %s25, 1
      %p106 = scmp.ne.s32.totalorder %s101, %s103
      %p107 = scmp.eq.s32.totalorder %s25, 0
      %p108 = por %p106, %p107
      %p109 = scmp.ne.s32.totalorder %s101, %s103
      %p110 = scmp.eq.s32.totalorder %s30, 1
      %p111 = por %p109, %p110
      %p112 = scmp.ne.s32.totalorder %s103, %s104
      %p113 = scmp.eq.s32.totalorder %s30, 0
      %p114 = por %p112, %p113
      %p115 = scmp.ne.s32.totalorder %s103, %s104
      %p116 = scmp.eq.s32.totalorder %s31, 1
      %p117 = por %p115, %p116
      %p119 = scmp.ne.s32.totalorder %s104, %s118
      %p120 = scmp.eq.s32.totalorder %s31, 0
      %p121 = por %p119, %p120
      %s123 = sadd.s32 %s122, 1
      %p126 = scmp.eq.s32.totalorder %s25, 1
      %p127 = scmp.ne.s32.totalorder %s122, %s124
      %p128 = scmp.eq.s32.totalorder %s25, 0
      %p129 = por %p127, %p128
      %p130 = scmp.ne.s32.totalorder %s122, %s124
      %p131 = scmp.eq.s32.totalorder %s30, 1
      %p132 = por %p130, %p131
      %p133 = scmp.ne.s32.totalorder %s124, %s125
      %p134 = scmp.eq.s32.totalorder %s30, 0
      %p135 = por %p133, %p134
      %p136 = scmp.ne.s32.totalorder %s124, %s125
      %p137 = scmp.eq.s32.totalorder %s31, 1
      %p138 = por %p136, %p137
      %p140 = scmp.ne.s32.totalorder %s125, %s139
      %p141 = scmp.eq.s32.totalorder %s31, 0
      %p142 = por %p140, %p141
      %s144 = sadd.s32 %s143, 1
      %p147 = scmp.eq.s32.totalorder %s25, 1
      %p148 = scmp.ne.s32.totalorder %s143, %s145
      %p149 = scmp.eq.s32.totalorder %s25, 0
      %p150 = por %p148, %p149
      %p151 = scmp.ne.s32.totalorder %s143, %s145
      %p152 = scmp.eq.s32.totalorder %s30, 1
      %p153 = por %p151, %p152
      %p154 = scmp.ne.s32.totalorder %s145, %s146
      %p155 = scmp.eq.s32.totalorder %s30, 0
      %p156 = por %p154, %p155
      %p157 = scmp.ne.s32.totalorder %s145, %s146
      %p158 = scmp.eq.s32.totalorder %s31, 1
      %p159 = por %p157, %p158
      %p161 = scmp.ne.s32.totalorder %s146, %s160
      %p162 = scmp.eq.s32.totalorder %s31, 0
      %p163 = por %p161, %p162
      %s165 = sadd.s32 %s164, 1
      %p168 = scmp.eq.s32.totalorder %s25, 1
      %p169 = scmp.ne.s32.totalorder %s164, %s166
      %p170 = scmp.eq.s32.totalorder %s25, 0
      %p171 = por %p169, %p170
      %p172 = scmp.ne.s32.totalorder %s164, %s166
      %p173 = scmp.eq.s32.totalorder %s30, 1
      %p174 = por %p172, %p173
      %p175 = scmp.ne.s32.totalorder %s166, %s167
      %p176 = scmp.eq.s32.totalorder %s30, 0
      %p177 = por %p175, %p176
      %p178 = scmp.ne.s32.totalorder %s166, %s167
      %p179 = scmp.eq.s32.totalorder %s31, 1
      %p180 = por %p178, %p179
      %p182 = scmp.ne.s32.totalorder %s167, %s181
      %p183 = scmp.eq.s32.totalorder %s31, 0
      %p184 = por %p182, %p183
      %s186 = sadd.s32 %s185, 1
      %p189 = scmp.eq.s32.totalorder %s25, 1
      %p190 = scmp.ne.s32.totalorder %s185, %s187
      %p191 = scmp.eq.s32.totalorder %s25, 0
      %p192 = por %p190, %p191
      %p193 = scmp.ne.s32.totalorder %s185, %s187
      %p194 = scmp.eq.s32.totalorder %s30, 1
      %p195 = por %p193, %p194
      %p196 = scmp.ne.s32.totalorder %s187, %s188
      %p197 = scmp.eq.s32.totalorder %s30, 0
      %p198 = por %p196, %p197
      %p199 = scmp.ne.s32.totalorder %s187, %s188
      %p200 = scmp.eq.s32.totalorder %s31, 1
      %p201 = por %p199, %p200
      %p203 = scmp.ne.s32.totalorder %s188, %s202
      %p204 = scmp.eq.s32.totalorder %s31, 0
      %p205 = por %p203, %p204
      %s207 = sadd.s32 %s206, 1
      %p210 = scmp.eq.s32.totalorder %s25, 1
      %p211 = scmp.ne.s32.totalorder %s206, %s208
      %p212 = scmp.eq.s32.totalorder %s25, 0
      %p213 = por %p211, %p212
      %p214 = scmp.ne.s32.totalorder %s206, %s208
      %p215 = scmp.eq.s32.totalorder %s30, 1
      %p216 = por %p214, %p215
      %p217 = scmp.ne.s32.totalorder %s208, %s209
      %p218 = scmp.eq.s32.totalorder %s30, 0
      %p219 = por %p217, %p218
      %p220 = scmp.ne.s32.totalorder %s208, %s209
      %p221 = scmp.eq.s32.totalorder %s31, 1
      %p222 = por %p220, %p221
      %p224 = scmp.ne.s32.totalorder %s209, %s223
      %p225 = scmp.eq.s32.totalorder %s31, 0
      %p226 = por %p224, %p225
      %s228 = sadd.s32 %s227, 1
      %p231 = scmp.eq.s32.totalorder %s25, 1
      %p232 = scmp.ne.s32.totalorder %s227, %s229
      %p233 = scmp.eq.s32.totalorder %s25, 0
      %p234 = por %p232, %p233
      %p235 = scmp.ne.s32.totalorder %s227, %s229
      %p236 = scmp.eq.s32.totalorder %s30, 1
      %p237 = por %p235, %p236
      %p238 = scmp.ne.s32.totalorder %s229, %s230
      %p239 = scmp.eq.s32.totalorder %s30, 0
      %p240 = por %p238, %p239
      %p241 = scmp.ne.s32.totalorder %s229, %s230
      %p242 = scmp.eq.s32.totalorder %s31, 1
      %p243 = por %p241, %p242
      %p245 = scmp.ne.s32.totalorder %s230, %s244
      %p246 = scmp.eq.s32.totalorder %s31, 0
      %p247 = por %p245, %p246
      %s249 = sadd.s32 %s248, 1
      %p252 = scmp.eq.s32.totalorder %s25, 1
      %p253 = scmp.ne.s32.totalorder %s248, %s250
      %p254 = scmp.eq.s32.totalorder %s25, 0
      %p255 = por %p253, %p254
      %p256 = scmp.ne.s32.totalorder %s248, %s250
      %p257 = scmp.eq.s32.totalorder %s30, 1
      %p258 = por %p256, %p257
      %p259 = scmp.ne.s32.totalorder %s250, %s251
      %p260 = scmp.eq.s32.totalorder %s30, 0
      %p261 = por %p259, %p260
      %p262 = scmp.ne.s32.totalorder %s250, %s251
      %p263 = scmp.eq.s32.totalorder %s31, 1
      %p264 = por %p262, %p263
      %p266 = scmp.ne.s32.totalorder %s251, %s265
      %p267 = scmp.eq.s32.totalorder %s31, 0
      %p268 = por %p266, %p267
      %s269 = ssub.s32 %s25, %s32
      %p270 = scmp.eq.s32.totalorder %s269, 0
      %s272 = sadd.s32 %s271, 1
      %s273 = scalar_select %p270, %s271, %s272
      %p276 = pneg %p270
      %p277 = scmp.eq.s32.totalorder %s25, 1
      %p278 = por %p276, %p277
      %p279 = scmp.ne.s32.totalorder %s271, %s274
      %p280 = scmp.eq.s32.totalorder %s25, 0
      %p281 = por %p279, %p280
      %p282 = scmp.ne.s32.totalorder %s271, %s274
      %p283 = scmp.eq.s32.totalorder %s30, 1
      %p284 = por %p282, %p283
      %p285 = scmp.ne.s32.totalorder %s274, %s275
      %p286 = scmp.eq.s32.totalorder %s30, 0
      %p287 = por %p285, %p286
      %p288 = scmp.ne.s32.totalorder %s274, %s275
      %p289 = scmp.eq.s32.totalorder %s31, 1
      %p290 = por %p288, %p289
      %p292 = scmp.ne.s32.totalorder %s275, %s291
      %p293 = scmp.eq.s32.totalorder %s31, 0
      %p294 = por %p292, %p293
      %p295 = scmp.le.s32.totalorder 1, %s25
      %p296 = scmp.lt.s32.totalorder %s25, 3
      %p297 = pnand %p295, %p296
      %p298 = pneg %p297
      // Predicated region
      $region9: #{tpu_custom_call.1} parent=5 // pred_check
        _
      $region10: #{tpu_custom_call.1} parent=5 // pred_check_branch
        %300 = sbr.rel (%p297) target = $region12
      $region11: #{tpu_custom_call.1} parent=5 // pred_region
        %s301 = ssub.s32 %s25, 1
        // Predicated region
        $region13: #{tpu_custom_call.1} parent=11 // pred_check
          %p302 = pneg %p72
        $region14: #{tpu_custom_call.1} parent=11 // pred_check_branch
          %304 = sbr.rel (%p302) target = $region16
        $region15: #{tpu_custom_call.1} parent=11 // pred_region
          %306 = vsyncadd [#allocation6], 0
          %s307 = sshll.u32 %s1, 4
          %s308 = int_to_ptr.hbm [resolvable:$true] %s307
          %s309 = sshll.u32 [#allocation5], 4
          %s310 = int_to_ptr.vmem [resolvable:$true] %s309
          %315 = dma.hbm_to_vmem [thread:$0]  %s308, 4096, %s310, [#allocation6], 128, 128, 8
        $region16: #{tpu_custom_call.1} parent=11 // pred_fallthru
          _
        // Predicated region
        $region17: #{tpu_custom_call.1} parent=11 // pred_check
          %p316 = pneg %p93
        $region18: #{tpu_custom_call.1} parent=11 // pred_check_branch
          %318 = sbr.rel (%p316) target = $region20
        $region19: #{tpu_custom_call.1} parent=11 // pred_region
          _
        $region20: #{tpu_custom_call.1} parent=11 // pred_fallthru
          _
        // Predicated region
        $region21: #{tpu_custom_call.1} parent=11 // pred_check
          %p319 = pneg %p114
        $region22: #{tpu_custom_call.1} parent=11 // pred_check_branch
          %321 = sbr.rel (%p319) target = $region24
        $region23: #{tpu_custom_call.1} parent=11 // pred_region
          %323 = vsyncadd [#allocation6], 0
          %s324 = sshll.u32 %s3, 4
          %s325 = int_to_ptr.hbm [resolvable:$true] %s324
          %s326 = sshll.u32 [#allocation7], 4
          %s327 = int_to_ptr.vmem [resolvable:$true] %s326
          %332 = dma.hbm_to_vmem [thread:$0]  %s325, 2048, %s327, [#allocation6], 128, 128, 8
        $region24: #{tpu_custom_call.1} parent=11 // pred_fallthru
          _
        // Predicated region
        $region25: #{tpu_custom_call.1} parent=11 // pred_check
          %p333 = pneg %p135
        $region26: #{tpu_custom_call.1} parent=11 // pred_check_branch
          %335 = sbr.rel (%p333) target = $region28
        $region27: #{tpu_custom_call.1} parent=11 // pred_region
          _
        $region28: #{tpu_custom_call.1} parent=11 // pred_fallthru
          _
        // Predicated region
        $region29: #{tpu_custom_call.1} parent=11 // pred_check
          %p336 = pneg %p156
        $region30: #{tpu_custom_call.1} parent=11 // pred_check_branch
          %338 = sbr.rel (%p336) target = $region32
        $region31: #{tpu_custom_call.1} parent=11 // pred_region
          %340 = vsyncadd [#allocation9], 0
          %s341 = sshll.u32 %s5, 4
          %s342 = int_to_ptr.hbm [resolvable:$true] %s341
          %s343 = sshll.u32 [#allocation8], 4
          %s344 = int_to_ptr.vmem [resolvable:$true] %s343
          %349 = dma.hbm_to_vmem [thread:$0]  %s342, 2048, %s344, [#allocation9], 128, 128, 8
        $region32: #{tpu_custom_call.1} parent=11 // pred_fallthru
          _
        // Predicated region
        $region33: #{tpu_custom_call.1} parent=11 // pred_check
          %p350 = pneg %p177
        $region34: #{tpu_custom_call.1} parent=11 // pred_check_branch
          %352 = sbr.rel (%p350) target = $region36
        $region35: #{tpu_custom_call.1} parent=11 // pred_region
          _
        $region36: #{tpu_custom_call.1} parent=11 // pred_fallthru
          _
        // Predicated region
        $region37: #{tpu_custom_call.1} parent=11 // pred_check
          %p353 = pneg %p198
        $region38: #{tpu_custom_call.1} parent=11 // pred_check_branch
          %355 = sbr.rel (%p353) target = $region40
        $region39: #{tpu_custom_call.1} parent=11 // pred_region
          _
        $region40: #{tpu_custom_call.1} parent=11 // pred_fallthru
          _
        // Predicated region
        $region41: #{tpu_custom_call.1} parent=11 // pred_check
          %p356 = pneg %p219
        $region42: #{tpu_custom_call.1} parent=11 // pred_check_branch
          %358 = sbr.rel (%p356) target = $region44
        $region43: #{tpu_custom_call.1} parent=11 // pred_region
          _
        $region44: #{tpu_custom_call.1} parent=11 // pred_fallthru
          _
        // Predicated region
        $region45: #{tpu_custom_call.1} parent=11 // pred_check
          %p359 = pneg %p240
        $region46: #{tpu_custom_call.1} parent=11 // pred_check_branch
          %361 = sbr.rel (%p359) target = $region48
        $region47: #{tpu_custom_call.1} parent=11 // pred_region
          _
        $region48: #{tpu_custom_call.1} parent=11 // pred_fallthru
          _
        // Predicated region
        $region49: #{tpu_custom_call.1} parent=11 // pred_check
          %p362 = pneg %p261
        $region50: #{tpu_custom_call.1} parent=11 // pred_check_branch
          %364 = sbr.rel (%p362) target = $region52
        $region51: #{tpu_custom_call.1} parent=11 // pred_region
          _
        $region52: #{tpu_custom_call.1} parent=11 // pred_fallthru
          _
      $region12: #{tpu_custom_call.1} parent=5 // pred_fallthru
        _
      %p365 = scmp.lt.s32.totalorder %s25, 2
      // Predicated region
      $region53: #{tpu_custom_call.1} parent=5 // pred_check
        %p366 = pneg %p365
      $region54: #{tpu_custom_call.1} parent=5 // pred_check_branch
        %368 = sbr.rel (%p366) target = $region56
      $region55: #{tpu_custom_call.1} parent=5 // pred_region
        // Predicated region
        $region57: #{tpu_custom_call.1} parent=55 // pred_check
          %p369 = pneg %p45
        $region58: #{tpu_custom_call.1} parent=55 // pred_check_branch
          %371 = sbr.rel (%p369) target = $region60
        $region59: #{tpu_custom_call.1} parent=55 // pred_region
          %s372 = sand.u32 %s35, 1
          %s373 = scalar_lea.sflag [#allocation3], %s372
          %s374 = sand.u32 %s35, 1
          %s375 = smul.addr %s374, 256
          %s376 = scalar_lea.vmem [#allocation2], %s375
          %s377 = smul.u32 16, %s25
          %379 = vsyncadd %s373, 0
          %s380 = smul.addr %s377, 2
          %s381 = smul.addr %s380, 8
          %s382 = scalar_lea.hbm %s0, %s381
          %s383 = sshll.u32 %s382, 4
          %s384 = int_to_ptr.hbm [resolvable:$true] %s383
          %s385 = sshll.u32 %s376, 4
          %s386 = int_to_ptr.vmem [resolvable:$true] %s385
          %391 = dma.hbm_to_vmem [thread:$0]  %s384, 4096, %s386, %s373, 256, 256, 16
        $region60: #{tpu_custom_call.1} parent=55 // pred_fallthru
          _
      $region56: #{tpu_custom_call.1} parent=5 // pred_fallthru
        _
      %p392 = scmp.le.s32.totalorder 1, %s25
      %p393 = scmp.lt.s32.totalorder %s25, 3
      %p394 = pnand %p392, %p393
      %p395 = pneg %p394
      // Predicated region
      $region61: #{tpu_custom_call.1} parent=5 // pred_check
        _
      $region62: #{tpu_custom_call.1} parent=5 // pred_check_branch
        %397 = sbr.rel (%p394) target = $region64
      $region63: #{tpu_custom_call.1} parent=5 // pred_region
        %s398 = ssub.s32 %s25, 1
        %s399 = sand.u32 %s38, 1
        %s400 = scalar_lea.sflag [#allocation3], %s399
        %s401 = sand.u32 %s38, 1
        %s402 = smul.addr %s401, 256
        %s403 = scalar_lea.vmem [#allocation2], %s402
        // Predicated region
        $region65: #{tpu_custom_call.1} parent=63 // pred_check
          %p404 = pneg %p51
        $region66: #{tpu_custom_call.1} parent=63 // pred_check_branch
          %406 = sbr.rel (%p404) target = $region68
        $region67: #{tpu_custom_call.1} parent=63 // pred_region
          %408 = dma.done %s400, 4096
        $region68: #{tpu_custom_call.1} parent=63 // pred_fallthru
          _
        // Predicated region
        $region69: #{tpu_custom_call.1} parent=63 // pred_check
          %p409 = pneg %p72
        $region70: #{tpu_custom_call.1} parent=63 // pred_check_branch
          %411 = sbr.rel (%p409) target = $region72
        $region71: #{tpu_custom_call.1} parent=63 // pred_region
          %413 = dma.done [#allocation6], 4096
        $region72: #{tpu_custom_call.1} parent=63 // pred_fallthru
          _
        // Predicated region
        $region73: #{tpu_custom_call.1} parent=63 // pred_check
          %p414 = pneg %p114
        $region74: #{tpu_custom_call.1} parent=63 // pred_check_branch
          %416 = sbr.rel (%p414) target = $region76
        $region75: #{tpu_custom_call.1} parent=63 // pred_region
          %418 = dma.done [#allocation6], 2048
        $region76: #{tpu_custom_call.1} parent=63 // pred_fallthru
          _
        // Predicated region
        $region77: #{tpu_custom_call.1} parent=63 // pred_check
          %p419 = pneg %p156
        $region78: #{tpu_custom_call.1} parent=63 // pred_check_branch
          %421 = sbr.rel (%p419) target = $region80
        $region79: #{tpu_custom_call.1} parent=63 // pred_region
          %423 = dma.done [#allocation9], 2048
        $region80: #{tpu_custom_call.1} parent=63 // pred_fallthru
          _
        %s424 = sand.u32 %s38, 1
        %s425 = scalar_lea.sflag [#allocation3], %s424
        %s426 = sand.u32 %s38, 1
        %s427 = smul.addr %s426, 256
        %s428 = scalar_lea.vmem [#allocation2], %s427
        %p429 = pneg %p51
        %p430 = pneg %p48
        %p431 = pneg %p72
        %p432 = pneg %p69
        %p433 = pneg %p93
        %p434 = pneg %p90
        %p435 = pneg %p114
        %p436 = pneg %p111
        %p437 = pneg %p135
        %p438 = pneg %p132
        %p439 = pneg %p156
        %p440 = pneg %p153
        %p441 = pneg %p177
        %p442 = pneg %p174
        %p443 = pneg %p198
        %p444 = pneg %p195
        %p445 = pneg %p219
        %p446 = pneg %p216
        %p447 = pneg %p240
        %p448 = pneg %p237
        %p449 = pneg %p261
        %p450 = pneg %p258
        %p451 = pneg %p287
        %p452 = pneg %p284
        %s453 = sand.u32 %s274, 1
        %s454 = scalar_lea.sflag [#allocation4], %s453
        %s455 = sand.u32 %s274, 1
        %s456 = smul.addr %s455, 128
        %s457 = scalar_lea.vmem [#allocation10], %s456
        %s458 = smul.u32 16, %s30
        %s459 = smul.u32 16, %s30
        %v460 = vld [vmem:[%s403] sm:$0xff]
        %v461 = vld [vmem:[%s403 + $0x8] sm:$0xff]
        %v462 = vld [vmem:[%s403 + $0x10] sm:$0xff]
        %v463 = vld [vmem:[%s403 + $0x18] sm:$0xff]
        %v464 = vld [vmem:[%s403 + $0x20] sm:$0xff]
        %v465 = vld [vmem:[%s403 + $0x28] sm:$0xff]
        %v466 = vld [vmem:[%s403 + $0x30] sm:$0xff]
        %v467 = vld [vmem:[%s403 + $0x38] sm:$0xff]
        %v468 = vld [vmem:[%s403 + $0x40] sm:$0xff]
        %v469 = vld [vmem:[%s403 + $0x48] sm:$0xff]
        %v470 = vld [vmem:[%s403 + $0x50] sm:$0xff]
        %v471 = vld [vmem:[%s403 + $0x58] sm:$0xff]
        %v472 = vld [vmem:[%s403 + $0x60] sm:$0xff]
        %v473 = vld [vmem:[%s403 + $0x68] sm:$0xff]
        %v474 = vld [vmem:[%s403 + $0x70] sm:$0xff]
        %v475 = vld [vmem:[%s403 + $0x78] sm:$0xff]
        %v476 = vld [vmem:[%s403 + $0x80] sm:$0xff]
        %v477 = vld [vmem:[%s403 + $0x88] sm:$0xff]
        %v478 = vld [vmem:[%s403 + $0x90] sm:$0xff]
        %v479 = vld [vmem:[%s403 + $0x98] sm:$0xff]
        %v480 = vld [vmem:[%s403 + $0xa0] sm:$0xff]
        %v481 = vld [vmem:[%s403 + $0xa8] sm:$0xff]
        %v482 = vld [vmem:[%s403 + $0xb0] sm:$0xff]
        %v483 = vld [vmem:[%s403 + $0xb8] sm:$0xff]
        %v484 = vld [vmem:[%s403 + $0xc0] sm:$0xff]
        %v485 = vld [vmem:[%s403 + $0xc8] sm:$0xff]
        %v486 = vld [vmem:[%s403 + $0xd0] sm:$0xff]
        %v487 = vld [vmem:[%s403 + $0xd8] sm:$0xff]
        %v488 = vld [vmem:[%s403 + $0xe0] sm:$0xff]
        %v489 = vld [vmem:[%s403 + $0xe8] sm:$0xff]
        %v490 = vld [vmem:[%s403 + $0xf0] sm:$0xff]
        %v491 = vld [vmem:[%s403 + $0xf8] sm:$0xff]
        %v492 = vld [vmem:[#allocation5] sm:$0xff]
        %v493 = vld [vmem:[#allocation5 + $0x8] sm:$0xff]
        %v494 = vld [vmem:[#allocation5 + $0x10] sm:$0xff]
        %v495 = vld [vmem:[#allocation5 + $0x18] sm:$0xff]
        %v496 = vld [vmem:[#allocation5 + $0x20] sm:$0xff]
        %v497 = vld [vmem:[#allocation5 + $0x28] sm:$0xff]
        %v498 = vld [vmem:[#allocation5 + $0x30] sm:$0xff]
        %v499 = vld [vmem:[#allocation5 + $0x38] sm:$0xff]
        %v500 = vld [vmem:[#allocation5 + $0x40] sm:$0xff]
        %v501 = vld [vmem:[#allocation5 + $0x48] sm:$0xff]
        %v502 = vld [vmem:[#allocation5 + $0x50] sm:$0xff]
        %v503 = vld [vmem:[#allocation5 + $0x58] sm:$0xff]
        %v504 = vld [vmem:[#allocation5 + $0x60] sm:$0xff]
        %v505 = vld [vmem:[#allocation5 + $0x68] sm:$0xff]
        %v506 = vld [vmem:[#allocation5 + $0x70] sm:$0xff]
        %v507 = vld [vmem:[#allocation5 + $0x78] sm:$0xff]
        %v508 = vld [vmem:[#allocation5 + $0x80] sm:$0xff]
        %v509 = vld [vmem:[#allocation5 + $0x88] sm:$0xff]
        %v510 = vld [vmem:[#allocation5 + $0x90] sm:$0xff]
        %v511 = vld [vmem:[#allocation5 + $0x98] sm:$0xff]
        %v512 = vld [vmem:[#allocation5 + $0xa0] sm:$0xff]
        %v513 = vld [vmem:[#allocation5 + $0xa8] sm:$0xff]
        %v514 = vld [vmem:[#allocation5 + $0xb0] sm:$0xff]
        %v515 = vld [vmem:[#allocation5 + $0xb8] sm:$0xff]
        %v516 = vld [vmem:[#allocation5 + $0xc0] sm:$0xff]
        %v517 = vld [vmem:[#allocation5 + $0xc8] sm:$0xff]
        %v518 = vld [vmem:[#allocation5 + $0xd0] sm:$0xff]
        %v519 = vld [vmem:[#allocation5 + $0xd8] sm:$0xff]
        %v520 = vld [vmem:[#allocation5 + $0xe0] sm:$0xff]
        %v521 = vld [vmem:[#allocation5 + $0xe8] sm:$0xff]
        %v522 = vld [vmem:[#allocation5 + $0xf0] sm:$0xff]
        %v523 = vld [vmem:[#allocation5 + $0xf8] sm:$0xff]
        %v524 = vld [vmem:[%s2] sm:$0x1]
        %v526 = vperm.slane %v524, 0
        %528 = vmatpush.msra.mxu0 %v507
        %529 = vmatpush.msra.mxu0 %v506
        %530 = vmatpush.msra.mxu0 %v505
        %531 = vmatpush.msra.mxu0 %v504
        %532 = vmatpush.msra.mxu0 %v503
        %533 = vmatpush.msra.mxu0 %v502
        %534 = vmatpush.msra.mxu0 %v501
        %535 = vmatpush.msra.mxu0 %v500
        %536 = vmatpush.msra.mxu0 %v499
        %537 = vmatpush.msra.mxu0 %v498
        %538 = vmatpush.msra.mxu0 %v497
        %539 = vmatpush.msra.mxu0 %v496
        %540 = vmatpush.msra.mxu0 %v495
        %541 = vmatpush.msra.mxu0 %v494
        %542 = vmatpush.msra.mxu0 %v493
        %543 = vmatpush.msra.mxu0 %v492
        %544 = vmatmul.f32.gmra.mxu0 %v460
        %v545 = vpop.f32.mrf.mxu0
        %v546 = vadd.f32 %v526, %v545
        %547 = vmatmul.f32.gmra.mxu0 %v462
        %v548 = vpop.f32.mrf.mxu0
        %v549 = vadd.f32 %v526, %v548
        %550 = vmatmul.f32.gmra.mxu0 %v464
        %v551 = vpop.f32.mrf.mxu0
        %v552 = vadd.f32 %v526, %v551
        %553 = vmatmul.f32.gmra.mxu0 %v466
        %v554 = vpop.f32.mrf.mxu0
        %v555 = vadd.f32 %v526, %v554
        %556 = vmatmul.f32.gmra.mxu0 %v468
        %v557 = vpop.f32.mrf.mxu0
        %v558 = vadd.f32 %v526, %v557
        %559 = vmatmul.f32.gmra.mxu0 %v470
        %v560 = vpop.f32.mrf.mxu0
        %v561 = vadd.f32 %v526, %v560
        %562 = vmatmul.f32.gmra.mxu0 %v472
        %v563 = vpop.f32.mrf.mxu0
        %v564 = vadd.f32 %v526, %v563
        %565 = vmatmul.f32.gmra.mxu0 %v474
        %v566 = vpop.f32.mrf.mxu0
        %v567 = vadd.f32 %v526, %v566
        %568 = vmatmul.f32.gmra.mxu0 %v476
        %v569 = vpop.f32.mrf.mxu0
        %v570 = vadd.f32 %v526, %v569
        %571 = vmatmul.f32.gmra.mxu0 %v478
        %v572 = vpop.f32.mrf.mxu0
        %v573 = vadd.f32 %v526, %v572
        %574 = vmatmul.f32.gmra.mxu0 %v480
        %v575 = vpop.f32.mrf.mxu0
        %v576 = vadd.f32 %v526, %v575
        %577 = vmatmul.f32.gmra.mxu0 %v482
        %v578 = vpop.f32.mrf.mxu0
        %v579 = vadd.f32 %v526, %v578
        %580 = vmatmul.f32.gmra.mxu0 %v484
        %v581 = vpop.f32.mrf.mxu0
        %v582 = vadd.f32 %v526, %v581
        %583 = vmatmul.f32.gmra.mxu0 %v486
        %v584 = vpop.f32.mrf.mxu0
        %v585 = vadd.f32 %v526, %v584
        %586 = vmatmul.f32.gmra.mxu0 %v488
        %v587 = vpop.f32.mrf.mxu0
        %v588 = vadd.f32 %v526, %v587
        %589 = vmatmul.f32.gmra.mxu0 %v490
        %v590 = vpop.f32.mrf.mxu0
        %v591 = vadd.f32 %v526, %v590
        %592 = vdwg.mxu0
        %593 = vmatpush.msra.mxu0 %v523
        %594 = vmatpush.msra.mxu0 %v522
        %595 = vmatpush.msra.mxu0 %v521
        %596 = vmatpush.msra.mxu0 %v520
        %597 = vmatpush.msra.mxu0 %v519
        %598 = vmatpush.msra.mxu0 %v518
        %599 = vmatpush.msra.mxu0 %v517
        %600 = vmatpush.msra.mxu0 %v516
        %601 = vmatpush.msra.mxu0 %v515
        %602 = vmatpush.msra.mxu0 %v514
        %603 = vmatpush.msra.mxu0 %v513
        %604 = vmatpush.msra.mxu0 %v512
        %605 = vmatpush.msra.mxu0 %v511
        %606 = vmatpush.msra.mxu0 %v510
        %607 = vmatpush.msra.mxu0 %v509
        %608 = vmatpush.msra.mxu0 %v508
        %609 = vmatmul.f32.gmra.mxu0 %v461
        %v610 = vpop.f32.mrf.mxu0
        %v611 = vadd.f32 %v546, %v610
        %612 = vmatmul.f32.gmra.mxu0 %v463
        %v613 = vpop.f32.mrf.mxu0
        %v614 = vadd.f32 %v549, %v613
        %615 = vmatmul.f32.gmra.mxu0 %v465
        %v616 = vpop.f32.mrf.mxu0
        %v617 = vadd.f32 %v552, %v616
        %618 = vmatmul.f32.gmra.mxu0 %v467
        %v619 = vpop.f32.mrf.mxu0
        %v620 = vadd.f32 %v555, %v619
        %621 = vmatmul.f32.gmra.mxu0 %v469
        %v622 = vpop.f32.mrf.mxu0
        %v623 = vadd.f32 %v558, %v622
        %624 = vmatmul.f32.gmra.mxu0 %v471
        %v625 = vpop.f32.mrf.mxu0
        %v626 = vadd.f32 %v561, %v625
        %627 = vmatmul.f32.gmra.mxu0 %v473
        %v628 = vpop.f32.mrf.mxu0
        %v629 = vadd.f32 %v564, %v628
        %630 = vmatmul.f32.gmra.mxu0 %v475
        %v631 = vpop.f32.mrf.mxu0
        %v632 = vadd.f32 %v567, %v631
        %633 = vmatmul.f32.gmra.mxu0 %v477
        %v634 = vpop.f32.mrf.mxu0
        %v635 = vadd.f32 %v570, %v634
        %636 = vmatmul.f32.gmra.mxu0 %v479
        %v637 = vpop.f32.mrf.mxu0
        %v638 = vadd.f32 %v573, %v637
        %639 = vmatmul.f32.gmra.mxu0 %v481
        %v640 = vpop.f32.mrf.mxu0
        %v641 = vadd.f32 %v576, %v640
        %642 = vmatmul.f32.gmra.mxu0 %v483
        %v643 = vpop.f32.mrf.mxu0
        %v644 = vadd.f32 %v579, %v643
        %645 = vmatmul.f32.gmra.mxu0 %v485
        %v646 = vpop.f32.mrf.mxu0
        %v647 = vadd.f32 %v582, %v646
        %648 = vmatmul.f32.gmra.mxu0 %v487
        %v649 = vpop.f32.mrf.mxu0
        %v650 = vadd.f32 %v585, %v649
        %651 = vmatmul.f32.gmra.mxu0 %v489
        %v652 = vpop.f32.mrf.mxu0
        %v653 = vadd.f32 %v588, %v652
        %654 = vmatmul.f32.gmra.mxu0 %v491
        %v655 = vpop.f32.mrf.mxu0
        %v656 = vadd.f32 %v591, %v655
        %657 = vdwg.mxu0
        %v658 = vld [vmem:[%s7] sm:$0x1]
        %v659 = vld [vmem:[%s8] sm:$0x1]
        %660 = vadd.xlane.f32.xlu0 %v611
        %v661 = vpop.xlane.xlu0 %660
        %662 = vadd.xlane.f32.xlu0 %v614
        %v663 = vpop.xlane.xlu0 %662
        %664 = vadd.xlane.f32.xlu0 %v617
        %v665 = vpop.xlane.xlu0 %664
        %666 = vadd.xlane.f32.xlu0 %v620
        %v667 = vpop.xlane.xlu0 %666
        %668 = vadd.xlane.f32.xlu0 %v623
        %v669 = vpop.xlane.xlu0 %668
        %670 = vadd.xlane.f32.xlu0 %v626
        %v671 = vpop.xlane.xlu0 %670
        %672 = vadd.xlane.f32.xlu0 %v629
        %v673 = vpop.xlane.xlu0 %672
        %674 = vadd.xlane.f32.xlu0 %v632
        %v675 = vpop.xlane.xlu0 %674
        %676 = vadd.xlane.f32.xlu0 %v635
        %v677 = vpop.xlane.xlu0 %676
        %678 = vadd.xlane.f32.xlu0 %v638
        %v679 = vpop.xlane.xlu0 %678
        %680 = vadd.xlane.f32.xlu0 %v641
        %v681 = vpop.xlane.xlu0 %680
        %682 = vadd.xlane.f32.xlu0 %v644
        %v683 = vpop.xlane.xlu0 %682
        %684 = vadd.xlane.f32.xlu0 %v647
        %v685 = vpop.xlane.xlu0 %684
        %686 = vadd.xlane.f32.xlu0 %v650
        %v687 = vpop.xlane.xlu0 %686
        %688 = vadd.xlane.f32.xlu0 %v653
        %v689 = vpop.xlane.xlu0 %688
        %690 = vadd.xlane.f32.xlu0 %v656
        %v691 = vpop.xlane.xlu0 %690
        %v692 = vmul.f32 %v611, %v611
        %v693 = vmul.f32 %v614, %v614
        %v694 = vmul.f32 %v617, %v617
        %v695 = vmul.f32 %v620, %v620
        %v696 = vmul.f32 %v623, %v623
        %v697 = vmul.f32 %v626, %v626
        %v698 = vmul.f32 %v629, %v629
        %v699 = vmul.f32 %v632, %v632
        %v700 = vmul.f32 %v635, %v635
        %v701 = vmul.f32 %v638, %v638
        %v702 = vmul.f32 %v641, %v641
        %v703 = vmul.f32 %v644, %v644
        %v704 = vmul.f32 %v647, %v647
        %v705 = vmul.f32 %v650, %v650
        %v706 = vmul.f32 %v653, %v653
        %v707 = vmul.f32 %v656, %v656
        %708 = vadd.xlane.f32.xlu0 %v692
        %v709 = vpop.xlane.xlu0 %708
        %710 = vadd.xlane.f32.xlu0 %v693
        %v711 = vpop.xlane.xlu0 %710
        %712 = vadd.xlane.f32.xlu0 %v694
        %v713 = vpop.xlane.xlu0 %712
        %714 = vadd.xlane.f32.xlu0 %v695
        %v715 = vpop.xlane.xlu0 %714
        %716 = vadd.xlane.f32.xlu0 %v696
        %v717 = vpop.xlane.xlu0 %716
        %718 = vadd.xlane.f32.xlu0 %v697
        %v719 = vpop.xlane.xlu0 %718
        %720 = vadd.xlane.f32.xlu0 %v698
        %v721 = vpop.xlane.xlu0 %720
        %722 = vadd.xlane.f32.xlu0 %v699
        %v723 = vpop.xlane.xlu0 %722
        %724 = vadd.xlane.f32.xlu0 %v700
        %v725 = vpop.xlane.xlu0 %724
        %726 = vadd.xlane.f32.xlu0 %v701
        %v727 = vpop.xlane.xlu0 %726
        %728 = vadd.xlane.f32.xlu0 %v702
        %v729 = vpop.xlane.xlu0 %728
        %730 = vadd.xlane.f32.xlu0 %v703
        %v731 = vpop.xlane.xlu0 %730
        %732 = vadd.xlane.f32.xlu0 %v704
        %v733 = vpop.xlane.xlu0 %732
        %734 = vadd.xlane.f32.xlu0 %v705
        %v735 = vpop.xlane.xlu0 %734
        %736 = vadd.xlane.f32.xlu0 %v706
        %v737 = vpop.xlane.xlu0 %736
        %738 = vadd.xlane.f32.xlu0 %v707
        %v739 = vpop.xlane.xlu0 %738
        %v740 = vmul.f32 %v661, 0.0078125
        %v741 = vmul.f32 %v663, 0.0078125
        %v742 = vmul.f32 %v665, 0.0078125
        %v743 = vmul.f32 %v667, 0.0078125
        %v744 = vmul.f32 %v669, 0.0078125
        %v745 = vmul.f32 %v671, 0.0078125
        %v746 = vmul.f32 %v673, 0.0078125
        %v747 = vmul.f32 %v675, 0.0078125
        %v748 = vmul.f32 %v677, 0.0078125
        %v749 = vmul.f32 %v679, 0.0078125
        %v750 = vmul.f32 %v681, 0.0078125
        %v751 = vmul.f32 %v683, 0.0078125
        %v752 = vmul.f32 %v685, 0.0078125
        %v753 = vmul.f32 %v687, 0.0078125
        %v754 = vmul.f32 %v689, 0.0078125
        %v755 = vmul.f32 %v691, 0.0078125
        %v756 = vmul.f32 %v709, 0.0078125
        %v757 = vmul.f32 %v711, 0.0078125
        %v758 = vmul.f32 %v713, 0.0078125
        %v759 = vmul.f32 %v715, 0.0078125
        %v760 = vmul.f32 %v717, 0.0078125
        %v761 = vmul.f32 %v719, 0.0078125
        %v762 = vmul.f32 %v721, 0.0078125
        %v763 = vmul.f32 %v723, 0.0078125
        %v764 = vmul.f32 %v725, 0.0078125
        %v765 = vmul.f32 %v727, 0.0078125
        %v766 = vmul.f32 %v729, 0.0078125
        %v767 = vmul.f32 %v731, 0.0078125
        %v768 = vmul.f32 %v733, 0.0078125
        %v769 = vmul.f32 %v735, 0.0078125
        %v770 = vmul.f32 %v737, 0.0078125
        %v771 = vmul.f32 %v739, 0.0078125
        %v772 = vmul.f32 %v740, %v740
        %v773 = vmul.f32 %v741, %v741
        %v774 = vmul.f32 %v742, %v742
        %v775 = vmul.f32 %v743, %v743
        %v776 = vmul.f32 %v744, %v744
        %v777 = vmul.f32 %v745, %v745
        %v778 = vmul.f32 %v746, %v746
        %v779 = vmul.f32 %v747, %v747
        %v780 = vmul.f32 %v748, %v748
        %v781 = vmul.f32 %v749, %v749
        %v782 = vmul.f32 %v750, %v750
        %v783 = vmul.f32 %v751, %v751
        %v784 = vmul.f32 %v752, %v752
        %v785 = vmul.f32 %v753, %v753
        %v786 = vmul.f32 %v754, %v754
        %v787 = vmul.f32 %v755, %v755
        %v788 = vsub.f32 %v756, %v772
        %v789 = vsub.f32 %v757, %v773
        %v790 = vsub.f32 %v758, %v774
        %v791 = vsub.f32 %v759, %v775
        %v792 = vsub.f32 %v760, %v776
        %v793 = vsub.f32 %v761, %v777
        %v794 = vsub.f32 %v762, %v778
        %v795 = vsub.f32 %v763, %v779
        %v796 = vsub.f32 %v764, %v780
        %v797 = vsub.f32 %v765, %v781
        %v798 = vsub.f32 %v766, %v782
        %v799 = vsub.f32 %v767, %v783
        %v800 = vsub.f32 %v768, %v784
        %v801 = vsub.f32 %v769, %v785
        %v802 = vsub.f32 %v770, %v786
        %v803 = vsub.f32 %v771, %v787
        %v804 = vsub.f32 %v611, %v740
        %v805 = vsub.f32 %v614, %v741
        %v806 = vsub.f32 %v617, %v742
        %v807 = vsub.f32 %v620, %v743
        %v808 = vsub.f32 %v623, %v744
        %v809 = vsub.f32 %v626, %v745
        %v810 = vsub.f32 %v629, %v746
        %v811 = vsub.f32 %v632, %v747
        %v812 = vsub.f32 %v635, %v748
        %v813 = vsub.f32 %v638, %v749
        %v814 = vsub.f32 %v641, %v750
        %v815 = vsub.f32 %v644, %v751
        %v816 = vsub.f32 %v647, %v752
        %v817 = vsub.f32 %v650, %v753
        %v818 = vsub.f32 %v653, %v754
        %v819 = vsub.f32 %v656, %v755
        %v820 = vadd.f32 %v788, 1e-05
        %v821 = vadd.f32 %v789, 1e-05
        %v822 = vadd.f32 %v790, 1e-05
        %v823 = vadd.f32 %v791, 1e-05
        %v824 = vadd.f32 %v792, 1e-05
        %v825 = vadd.f32 %v793, 1e-05
        %v826 = vadd.f32 %v794, 1e-05
        %v827 = vadd.f32 %v795, 1e-05
        %v828 = vadd.f32 %v796, 1e-05
        %v829 = vadd.f32 %v797, 1e-05
        %v830 = vadd.f32 %v798, 1e-05
        %v831 = vadd.f32 %v799, 1e-05
        %v832 = vadd.f32 %v800, 1e-05
        %v833 = vadd.f32 %v801, 1e-05
        %v834 = vadd.f32 %v802, 1e-05
        %v835 = vadd.f32 %v803, 1e-05
        %v836 = vrsqrt.pop %v820
        %v837 = vmul.f32 %v836, %v820
        %v838 = vmul.f32 %v837, %v836
        %v839 = vmul.f32 0.5, %v838
        %v840 = vsub.f32 1.5, %v839
        %v841 = vmul.f32 %v836, %v840
        %vm842 = vweird.f32 %v820
        %vm843 = vweird.f32 %v836
        %vm844 = vmor %vm842, %vm843
        %v845 = vsel %vm844, %v836, %v841
        %v846 = vrsqrt.pop %v821
        %v847 = vmul.f32 %v846, %v821
        %v848 = vmul.f32 %v847, %v846
        %v849 = vmul.f32 0.5, %v848
        %v850 = vsub.f32 1.5, %v849
        %v851 = vmul.f32 %v846, %v850
        %vm852 = vweird.f32 %v821
        %vm853 = vweird.f32 %v846
        %vm854 = vmor %vm852, %vm853
        %v855 = vsel %vm854, %v846, %v851
        %v856 = vrsqrt.pop %v822
        %v857 = vmul.f32 %v856, %v822
        %v858 = vmul.f32 %v857, %v856
        %v859 = vmul.f32 0.5, %v858
        %v860 = vsub.f32 1.5, %v859
        %v861 = vmul.f32 %v856, %v860
        %vm862 = vweird.f32 %v822
        %vm863 = vweird.f32 %v856
        %vm864 = vmor %vm862, %vm863
        %v865 = vsel %vm864, %v856, %v861
        %v866 = vrsqrt.pop %v823
        %v867 = vmul.f32 %v866, %v823
        %v868 = vmul.f32 %v867, %v866
        %v869 = vmul.f32 0.5, %v868
        %v870 = vsub.f32 1.5, %v869
        %v871 = vmul.f32 %v866, %v870
        %vm872 = vweird.f32 %v823
        %vm873 = vweird.f32 %v866
        %vm874 = vmor %vm872, %vm873
        %v875 = vsel %vm874, %v866, %v871
        %v876 = vrsqrt.pop %v824
        %v877 = vmul.f32 %v876, %v824
        %v878 = vmul.f32 %v877, %v876
        %v879 = vmul.f32 0.5, %v878
        %v880 = vsub.f32 1.5, %v879
        %v881 = vmul.f32 %v876, %v880
        %vm882 = vweird.f32 %v824
        %vm883 = vweird.f32 %v876
        %vm884 = vmor %vm882, %vm883
        %v885 = vsel %vm884, %v876, %v881
        %v886 = vrsqrt.pop %v825
        %v887 = vmul.f32 %v886, %v825
        %v888 = vmul.f32 %v887, %v886
        %v889 = vmul.f32 0.5, %v888
        %v890 = vsub.f32 1.5, %v889
        %v891 = vmul.f32 %v886, %v890
        %vm892 = vweird.f32 %v825
        %vm893 = vweird.f32 %v886
        %vm894 = vmor %vm892, %vm893
        %v895 = vsel %vm894, %v886, %v891
        %v896 = vrsqrt.pop %v826
        %v897 = vmul.f32 %v896, %v826
        %v898 = vmul.f32 %v897, %v896
        %v899 = vmul.f32 0.5, %v898
        %v900 = vsub.f32 1.5, %v899
        %v901 = vmul.f32 %v896, %v900
        %vm902 = vweird.f32 %v826
        %vm903 = vweird.f32 %v896
        %vm904 = vmor %vm902, %vm903
        %v905 = vsel %vm904, %v896, %v901
        %v906 = vrsqrt.pop %v827
        %v907 = vmul.f32 %v906, %v827
        %v908 = vmul.f32 %v907, %v906
        %v909 = vmul.f32 0.5, %v908
        %v910 = vsub.f32 1.5, %v909
        %v911 = vmul.f32 %v906, %v910
        %vm912 = vweird.f32 %v827
        %vm913 = vweird.f32 %v906
        %vm914 = vmor %vm912, %vm913
        %v915 = vsel %vm914, %v906, %v911
        %v916 = vrsqrt.pop %v828
        %v917 = vmul.f32 %v916, %v828
        %v918 = vmul.f32 %v917, %v916
        %v919 = vmul.f32 0.5, %v918
        %v920 = vsub.f32 1.5, %v919
        %v921 = vmul.f32 %v916, %v920
        %vm922 = vweird.f32 %v828
        %vm923 = vweird.f32 %v916
        %vm924 = vmor %vm922, %vm923
        %v925 = vsel %vm924, %v916, %v921
        %v926 = vrsqrt.pop %v829
        %v927 = vmul.f32 %v926, %v829
        %v928 = vmul.f32 %v927, %v926
        %v929 = vmul.f32 0.5, %v928
        %v930 = vsub.f32 1.5, %v929
        %v931 = vmul.f32 %v926, %v930
        %vm932 = vweird.f32 %v829
        %vm933 = vweird.f32 %v926
        %vm934 = vmor %vm932, %vm933
        %v935 = vsel %vm934, %v926, %v931
        %v936 = vrsqrt.pop %v830
        %v937 = vmul.f32 %v936, %v830
        %v938 = vmul.f32 %v937, %v936
        %v939 = vmul.f32 0.5, %v938
        %v940 = vsub.f32 1.5, %v939
        %v941 = vmul.f32 %v936, %v940
        %vm942 = vweird.f32 %v830
        %vm943 = vweird.f32 %v936
        %vm944 = vmor %vm942, %vm943
        %v945 = vsel %vm944, %v936, %v941
        %v946 = vrsqrt.pop %v831
        %v947 = vmul.f32 %v946, %v831
        %v948 = vmul.f32 %v947, %v946
        %v949 = vmul.f32 0.5, %v948
        %v950 = vsub.f32 1.5, %v949
        %v951 = vmul.f32 %v946, %v950
        %vm952 = vweird.f32 %v831
        %vm953 = vweird.f32 %v946
        %vm954 = vmor %vm952, %vm953
        %v955 = vsel %vm954, %v946, %v951
        %v956 = vrsqrt.pop %v832
        %v957 = vmul.f32 %v956, %v832
        %v958 = vmul.f32 %v957, %v956
        %v959 = vmul.f32 0.5, %v958
        %v960 = vsub.f32 1.5, %v959
        %v961 = vmul.f32 %v956, %v960
        %vm962 = vweird.f32 %v832
        %vm963 = vweird.f32 %v956
        %vm964 = vmor %vm962, %vm963
        %v965 = vsel %vm964, %v956, %v961
        %v966 = vrsqrt.pop %v833
        %v967 = vmul.f32 %v966, %v833
        %v968 = vmul.f32 %v967, %v966
        %v969 = vmul.f32 0.5, %v968
        %v970 = vsub.f32 1.5, %v969
        %v971 = vmul.f32 %v966, %v970
        %vm972 = vweird.f32 %v833
        %vm973 = vweird.f32 %v966
        %vm974 = vmor %vm972, %vm973
        %v975 = vsel %vm974, %v966, %v971
        %v976 = vrsqrt.pop %v834
        %v977 = vmul.f32 %v976, %v834
        %v978 = vmul.f32 %v977, %v976
        %v979 = vmul.f32 0.5, %v978
        %v980 = vsub.f32 1.5, %v979
        %v981 = vmul.f32 %v976, %v980
        %vm982 = vweird.f32 %v834
        %vm983 = vweird.f32 %v976
        %vm984 = vmor %vm982, %vm983
        %v985 = vsel %vm984, %v976, %v981
        %v986 = vrsqrt.pop %v835
        %v987 = vmul.f32 %v986, %v835
        %v988 = vmul.f32 %v987, %v986
        %v989 = vmul.f32 0.5, %v988
        %v990 = vsub.f32 1.5, %v989
        %v991 = vmul.f32 %v986, %v990
        %vm992 = vweird.f32 %v835
        %vm993 = vweird.f32 %v986
        %vm994 = vmor %vm992, %vm993
        %v995 = vsel %vm994, %v986, %v991
        %v996 = vmul.f32 %v804, %v845
        %v997 = vmul.f32 %v805, %v855
        %v998 = vmul.f32 %v806, %v865
        %v999 = vmul.f32 %v807, %v875
        %v1000 = vmul.f32 %v808, %v885
        %v1001 = vmul.f32 %v809, %v895
        %v1002 = vmul.f32 %v810, %v905
        %v1003 = vmul.f32 %v811, %v915
        %v1004 = vmul.f32 %v812, %v925
        %v1005 = vmul.f32 %v813, %v935
        %v1006 = vmul.f32 %v814, %v945
        %v1007 = vmul.f32 %v815, %v955
        %v1008 = vmul.f32 %v816, %v965
        %v1009 = vmul.f32 %v817, %v975
        %v1010 = vmul.f32 %v818, %v985
        %v1011 = vmul.f32 %v819, %v995
        %v1013 = vperm.slane %v658, 0
        %v1015 = vmul.f32 %v996, %v1013
        %v1016 = vmul.f32 %v997, %v1013
        %v1017 = vmul.f32 %v998, %v1013
        %v1018 = vmul.f32 %v999, %v1013
        %v1019 = vmul.f32 %v1000, %v1013
        %v1020 = vmul.f32 %v1001, %v1013
        %v1021 = vmul.f32 %v1002, %v1013
        %v1022 = vmul.f32 %v1003, %v1013
        %v1023 = vmul.f32 %v1004, %v1013
        %v1024 = vmul.f32 %v1005, %v1013
        %v1025 = vmul.f32 %v1006, %v1013
        %v1026 = vmul.f32 %v1007, %v1013
        %v1027 = vmul.f32 %v1008, %v1013
        %v1028 = vmul.f32 %v1009, %v1013
        %v1029 = vmul.f32 %v1010, %v1013
        %v1030 = vmul.f32 %v1011, %v1013
        %v1032 = vperm.slane %v659, 0
        %v1034 = vadd.f32 %v1015, %v1032
        %v1035 = vadd.f32 %v1016, %v1032
        %v1036 = vadd.f32 %v1017, %v1032
        %v1037 = vadd.f32 %v1018, %v1032
        %v1038 = vadd.f32 %v1019, %v1032
        %v1039 = vadd.f32 %v1020, %v1032
        %v1040 = vadd.f32 %v1021, %v1032
        %v1041 = vadd.f32 %v1022, %v1032
        %v1042 = vadd.f32 %v1023, %v1032
        %v1043 = vadd.f32 %v1024, %v1032
        %v1044 = vadd.f32 %v1025, %v1032
        %v1045 = vadd.f32 %v1026, %v1032
        %v1046 = vadd.f32 %v1027, %v1032
        %v1047 = vadd.f32 %v1028, %v1032
        %v1048 = vadd.f32 %v1029, %v1032
        %v1049 = vadd.f32 %v1030, %v1032
        %v1050 = vmax.f32 %v1034, 0.0
        %v1051 = vmax.f32 %v1035, 0.0
        %v1052 = vmax.f32 %v1036, 0.0
        %v1053 = vmax.f32 %v1037, 0.0
        %v1054 = vmax.f32 %v1038, 0.0
        %v1055 = vmax.f32 %v1039, 0.0
        %v1056 = vmax.f32 %v1040, 0.0
        %v1057 = vmax.f32 %v1041, 0.0
        %v1058 = vmax.f32 %v1042, 0.0
        %v1059 = vmax.f32 %v1043, 0.0
        %v1060 = vmax.f32 %v1044, 0.0
        %v1061 = vmax.f32 %v1045, 0.0
        %v1062 = vmax.f32 %v1046, 0.0
        %v1063 = vmax.f32 %v1047, 0.0
        %v1064 = vmax.f32 %v1048, 0.0
        %v1065 = vmax.f32 %v1049, 0.0
        %v1066 = vld [vmem:[#allocation7] sm:$0xff]
        %v1067 = vld [vmem:[#allocation7 + $0x8] sm:$0xff]
        %v1068 = vld [vmem:[#allocation7 + $0x10] sm:$0xff]
        %v1069 = vld [vmem:[#allocation7 + $0x18] sm:$0xff]
        %v1070 = vld [vmem:[#allocation7 + $0x20] sm:$0xff]
        %v1071 = vld [vmem:[#allocation7 + $0x28] sm:$0xff]
        %v1072 = vld [vmem:[#allocation7 + $0x30] sm:$0xff]
        %v1073 = vld [vmem:[#allocation7 + $0x38] sm:$0xff]
        %v1074 = vld [vmem:[#allocation7 + $0x40] sm:$0xff]
        %v1075 = vld [vmem:[#allocation7 + $0x48] sm:$0xff]
        %v1076 = vld [vmem:[#allocation7 + $0x50] sm:$0xff]
        %v1077 = vld [vmem:[#allocation7 + $0x58] sm:$0xff]
        %v1078 = vld [vmem:[#allocation7 + $0x60] sm:$0xff]
        %v1079 = vld [vmem:[#allocation7 + $0x68] sm:$0xff]
        %v1080 = vld [vmem:[#allocation7 + $0x70] sm:$0xff]
        %v1081 = vld [vmem:[#allocation7 + $0x78] sm:$0xff]
        %v1082 = vld [vmem:[%s4] sm:$0x1]
        %v1084 = vperm.slane %v1082, 0
        %1086 = vmatpush.msra.mxu0 %v1081
        %1087 = vmatpush.msra.mxu0 %v1080
        %1088 = vmatpush.msra.mxu0 %v1079
        %1089 = vmatpush.msra.mxu0 %v1078
        %1090 = vmatpush.msra.mxu0 %v1077
        %1091 = vmatpush.msra.mxu0 %v1076
        %1092 = vmatpush.msra.mxu0 %v1075
        %1093 = vmatpush.msra.mxu0 %v1074
        %1094 = vmatpush.msra.mxu0 %v1073
        %1095 = vmatpush.msra.mxu0 %v1072
        %1096 = vmatpush.msra.mxu0 %v1071
        %1097 = vmatpush.msra.mxu0 %v1070
        %1098 = vmatpush.msra.mxu0 %v1069
        %1099 = vmatpush.msra.mxu0 %v1068
        %1100 = vmatpush.msra.mxu0 %v1067
        %1101 = vmatpush.msra.mxu0 %v1066
        %1102 = vmatmul.f32.gmra.mxu0 %v1050
        %v1103 = vpop.f32.mrf.mxu0
        %v1104 = vadd.f32 %v1084, %v1103
        %1105 = vmatmul.f32.gmra.mxu0 %v1051
        %v1106 = vpop.f32.mrf.mxu0
        %v1107 = vadd.f32 %v1084, %v1106
        %1108 = vmatmul.f32.gmra.mxu0 %v1052
        %v1109 = vpop.f32.mrf.mxu0
        %v1110 = vadd.f32 %v1084, %v1109
        %1111 = vmatmul.f32.gmra.mxu0 %v1053
        %v1112 = vpop.f32.mrf.mxu0
        %v1113 = vadd.f32 %v1084, %v1112
        %1114 = vmatmul.f32.gmra.mxu0 %v1054
        %v1115 = vpop.f32.mrf.mxu0
        %v1116 = vadd.f32 %v1084, %v1115
        %1117 = vmatmul.f32.gmra.mxu0 %v1055
        %v1118 = vpop.f32.mrf.mxu0
        %v1119 = vadd.f32 %v1084, %v1118
        %1120 = vmatmul.f32.gmra.mxu0 %v1056
        %v1121 = vpop.f32.mrf.mxu0
        %v1122 = vadd.f32 %v1084, %v1121
        %1123 = vmatmul.f32.gmra.mxu0 %v1057
        %v1124 = vpop.f32.mrf.mxu0
        %v1125 = vadd.f32 %v1084, %v1124
        %1126 = vmatmul.f32.gmra.mxu0 %v1058
        %v1127 = vpop.f32.mrf.mxu0
        %v1128 = vadd.f32 %v1084, %v1127
        %1129 = vmatmul.f32.gmra.mxu0 %v1059
        %v1130 = vpop.f32.mrf.mxu0
        %v1131 = vadd.f32 %v1084, %v1130
        %1132 = vmatmul.f32.gmra.mxu0 %v1060
        %v1133 = vpop.f32.mrf.mxu0
        %v1134 = vadd.f32 %v1084, %v1133
        %1135 = vmatmul.f32.gmra.mxu0 %v1061
        %v1136 = vpop.f32.mrf.mxu0
        %v1137 = vadd.f32 %v1084, %v1136
        %1138 = vmatmul.f32.gmra.mxu0 %v1062
        %v1139 = vpop.f32.mrf.mxu0
        %v1140 = vadd.f32 %v1084, %v1139
        %1141 = vmatmul.f32.gmra.mxu0 %v1063
        %v1142 = vpop.f32.mrf.mxu0
        %v1143 = vadd.f32 %v1084, %v1142
        %1144 = vmatmul.f32.gmra.mxu0 %v1064
        %v1145 = vpop.f32.mrf.mxu0
        %v1146 = vadd.f32 %v1084, %v1145
        %1147 = vmatmul.f32.gmra.mxu0 %v1065
        %v1148 = vpop.f32.mrf.mxu0
        %v1149 = vadd.f32 %v1084, %v1148
        %1150 = vdwg.mxu0
        %v1151 = vld [vmem:[%s9] sm:$0x1]
        %v1152 = vld [vmem:[%s10] sm:$0x1]
        %1153 = vadd.xlane.f32.xlu0 %v1104
        %v1154 = vpop.xlane.xlu0 %1153
        %1155 = vadd.xlane.f32.xlu0 %v1107
        %v1156 = vpop.xlane.xlu0 %1155
        %1157 = vadd.xlane.f32.xlu0 %v1110
        %v1158 = vpop.xlane.xlu0 %1157
        %1159 = vadd.xlane.f32.xlu0 %v1113
        %v1160 = vpop.xlane.xlu0 %1159
        %1161 = vadd.xlane.f32.xlu0 %v1116
        %v1162 = vpop.xlane.xlu0 %1161
        %1163 = vadd.xlane.f32.xlu0 %v1119
        %v1164 = vpop.xlane.xlu0 %1163
        %1165 = vadd.xlane.f32.xlu0 %v1122
        %v1166 = vpop.xlane.xlu0 %1165
        %1167 = vadd.xlane.f32.xlu0 %v1125
        %v1168 = vpop.xlane.xlu0 %1167
        %1169 = vadd.xlane.f32.xlu0 %v1128
        %v1170 = vpop.xlane.xlu0 %1169
        %1171 = vadd.xlane.f32.xlu0 %v1131
        %v1172 = vpop.xlane.xlu0 %1171
        %1173 = vadd.xlane.f32.xlu0 %v1134
        %v1174 = vpop.xlane.xlu0 %1173
        %1175 = vadd.xlane.f32.xlu0 %v1137
        %v1176 = vpop.xlane.xlu0 %1175
        %1177 = vadd.xlane.f32.xlu0 %v1140
        %v1178 = vpop.xlane.xlu0 %1177
        %1179 = vadd.xlane.f32.xlu0 %v1143
        %v1180 = vpop.xlane.xlu0 %1179
        %1181 = vadd.xlane.f32.xlu0 %v1146
        %v1182 = vpop.xlane.xlu0 %1181
        %1183 = vadd.xlane.f32.xlu0 %v1149
        %v1184 = vpop.xlane.xlu0 %1183
        %v1185 = vmul.f32 %v1104, %v1104
        %v1186 = vmul.f32 %v1107, %v1107
        %v1187 = vmul.f32 %v1110, %v1110
        %v1188 = vmul.f32 %v1113, %v1113
        %v1189 = vmul.f32 %v1116, %v1116
        %v1190 = vmul.f32 %v1119, %v1119
        %v1191 = vmul.f32 %v1122, %v1122
        %v1192 = vmul.f32 %v1125, %v1125
        %v1193 = vmul.f32 %v1128, %v1128
        %v1194 = vmul.f32 %v1131, %v1131
        %v1195 = vmul.f32 %v1134, %v1134
        %v1196 = vmul.f32 %v1137, %v1137
        %v1197 = vmul.f32 %v1140, %v1140
        %v1198 = vmul.f32 %v1143, %v1143
        %v1199 = vmul.f32 %v1146, %v1146
        %v1200 = vmul.f32 %v1149, %v1149
        %1201 = vadd.xlane.f32.xlu0 %v1185
        %v1202 = vpop.xlane.xlu0 %1201
        %1203 = vadd.xlane.f32.xlu0 %v1186
        %v1204 = vpop.xlane.xlu0 %1203
        %1205 = vadd.xlane.f32.xlu0 %v1187
        %v1206 = vpop.xlane.xlu0 %1205
        %1207 = vadd.xlane.f32.xlu0 %v1188
        %v1208 = vpop.xlane.xlu0 %1207
        %1209 = vadd.xlane.f32.xlu0 %v1189
        %v1210 = vpop.xlane.xlu0 %1209
        %1211 = vadd.xlane.f32.xlu0 %v1190
        %v1212 = vpop.xlane.xlu0 %1211
        %1213 = vadd.xlane.f32.xlu0 %v1191
        %v1214 = vpop.xlane.xlu0 %1213
        %1215 = vadd.xlane.f32.xlu0 %v1192
        %v1216 = vpop.xlane.xlu0 %1215
        %1217 = vadd.xlane.f32.xlu0 %v1193
        %v1218 = vpop.xlane.xlu0 %1217
        %1219 = vadd.xlane.f32.xlu0 %v1194
        %v1220 = vpop.xlane.xlu0 %1219
        %1221 = vadd.xlane.f32.xlu0 %v1195
        %v1222 = vpop.xlane.xlu0 %1221
        %1223 = vadd.xlane.f32.xlu0 %v1196
        %v1224 = vpop.xlane.xlu0 %1223
        %1225 = vadd.xlane.f32.xlu0 %v1197
        %v1226 = vpop.xlane.xlu0 %1225
        %1227 = vadd.xlane.f32.xlu0 %v1198
        %v1228 = vpop.xlane.xlu0 %1227
        %1229 = vadd.xlane.f32.xlu0 %v1199
        %v1230 = vpop.xlane.xlu0 %1229
        %1231 = vadd.xlane.f32.xlu0 %v1200
        %v1232 = vpop.xlane.xlu0 %1231
        %v1233 = vmul.f32 %v1154, 0.0078125
        %v1234 = vmul.f32 %v1156, 0.0078125
        %v1235 = vmul.f32 %v1158, 0.0078125
        %v1236 = vmul.f32 %v1160, 0.0078125
        %v1237 = vmul.f32 %v1162, 0.0078125
        %v1238 = vmul.f32 %v1164, 0.0078125
        %v1239 = vmul.f32 %v1166, 0.0078125
        %v1240 = vmul.f32 %v1168, 0.0078125
        %v1241 = vmul.f32 %v1170, 0.0078125
        %v1242 = vmul.f32 %v1172, 0.0078125
        %v1243 = vmul.f32 %v1174, 0.0078125
        %v1244 = vmul.f32 %v1176, 0.0078125
        %v1245 = vmul.f32 %v1178, 0.0078125
        %v1246 = vmul.f32 %v1180, 0.0078125
        %v1247 = vmul.f32 %v1182, 0.0078125
        %v1248 = vmul.f32 %v1184, 0.0078125
        %v1249 = vmul.f32 %v1202, 0.0078125
        %v1250 = vmul.f32 %v1204, 0.0078125
        %v1251 = vmul.f32 %v1206, 0.0078125
        %v1252 = vmul.f32 %v1208, 0.0078125
        %v1253 = vmul.f32 %v1210, 0.0078125
        %v1254 = vmul.f32 %v1212, 0.0078125
        %v1255 = vmul.f32 %v1214, 0.0078125
        %v1256 = vmul.f32 %v1216, 0.0078125
        %v1257 = vmul.f32 %v1218, 0.0078125
        %v1258 = vmul.f32 %v1220, 0.0078125
        %v1259 = vmul.f32 %v1222, 0.0078125
        %v1260 = vmul.f32 %v1224, 0.0078125
        %v1261 = vmul.f32 %v1226, 0.0078125
        %v1262 = vmul.f32 %v1228, 0.0078125
        %v1263 = vmul.f32 %v1230, 0.0078125
        %v1264 = vmul.f32 %v1232, 0.0078125
        %v1265 = vmul.f32 %v1233, %v1233
        %v1266 = vmul.f32 %v1234, %v1234
        %v1267 = vmul.f32 %v1235, %v1235
        %v1268 = vmul.f32 %v1236, %v1236
        %v1269 = vmul.f32 %v1237, %v1237
        %v1270 = vmul.f32 %v1238, %v1238
        %v1271 = vmul.f32 %v1239, %v1239
        %v1272 = vmul.f32 %v1240, %v1240
        %v1273 = vmul.f32 %v1241, %v1241
        %v1274 = vmul.f32 %v1242, %v1242
        %v1275 = vmul.f32 %v1243, %v1243
        %v1276 = vmul.f32 %v1244, %v1244
        %v1277 = vmul.f32 %v1245, %v1245
        %v1278 = vmul.f32 %v1246, %v1246
        %v1279 = vmul.f32 %v1247, %v1247
        %v1280 = vmul.f32 %v1248, %v1248
        %v1281 = vsub.f32 %v1249, %v1265
        %v1282 = vsub.f32 %v1250, %v1266
        %v1283 = vsub.f32 %v1251, %v1267
        %v1284 = vsub.f32 %v1252, %v1268
        %v1285 = vsub.f32 %v1253, %v1269
        %v1286 = vsub.f32 %v1254, %v1270
        %v1287 = vsub.f32 %v1255, %v1271
        %v1288 = vsub.f32 %v1256, %v1272
        %v1289 = vsub.f32 %v1257, %v1273
        %v1290 = vsub.f32 %v1258, %v1274
        %v1291 = vsub.f32 %v1259, %v1275
        %v1292 = vsub.f32 %v1260, %v1276
        %v1293 = vsub.f32 %v1261, %v1277
        %v1294 = vsub.f32 %v1262, %v1278
        %v1295 = vsub.f32 %v1263, %v1279
        %v1296 = vsub.f32 %v1264, %v1280
        %v1297 = vsub.f32 %v1104, %v1233
        %v1298 = vsub.f32 %v1107, %v1234
        %v1299 = vsub.f32 %v1110, %v1235
        %v1300 = vsub.f32 %v1113, %v1236
        %v1301 = vsub.f32 %v1116, %v1237
        %v1302 = vsub.f32 %v1119, %v1238
        %v1303 = vsub.f32 %v1122, %v1239
        %v1304 = vsub.f32 %v1125, %v1240
        %v1305 = vsub.f32 %v1128, %v1241
        %v1306 = vsub.f32 %v1131, %v1242
        %v1307 = vsub.f32 %v1134, %v1243
        %v1308 = vsub.f32 %v1137, %v1244
        %v1309 = vsub.f32 %v1140, %v1245
        %v1310 = vsub.f32 %v1143, %v1246
        %v1311 = vsub.f32 %v1146, %v1247
        %v1312 = vsub.f32 %v1149, %v1248
        %v1313 = vadd.f32 %v1281, 1e-05
        %v1314 = vadd.f32 %v1282, 1e-05
        %v1315 = vadd.f32 %v1283, 1e-05
        %v1316 = vadd.f32 %v1284, 1e-05
        %v1317 = vadd.f32 %v1285, 1e-05
        %v1318 = vadd.f32 %v1286, 1e-05
        %v1319 = vadd.f32 %v1287, 1e-05
        %v1320 = vadd.f32 %v1288, 1e-05
        %v1321 = vadd.f32 %v1289, 1e-05
        %v1322 = vadd.f32 %v1290, 1e-05
        %v1323 = vadd.f32 %v1291, 1e-05
        %v1324 = vadd.f32 %v1292, 1e-05
        %v1325 = vadd.f32 %v1293, 1e-05
        %v1326 = vadd.f32 %v1294, 1e-05
        %v1327 = vadd.f32 %v1295, 1e-05
        %v1328 = vadd.f32 %v1296, 1e-05
        %v1329 = vrsqrt.pop %v1313
        %v1330 = vmul.f32 %v1329, %v1313
        %v1331 = vmul.f32 %v1330, %v1329
        %v1332 = vmul.f32 0.5, %v1331
        %v1333 = vsub.f32 1.5, %v1332
        %v1334 = vmul.f32 %v1329, %v1333
        %vm1335 = vweird.f32 %v1313
        %vm1336 = vweird.f32 %v1329
        %vm1337 = vmor %vm1335, %vm1336
        %v1338 = vsel %vm1337, %v1329, %v1334
        %v1339 = vrsqrt.pop %v1314
        %v1340 = vmul.f32 %v1339, %v1314
        %v1341 = vmul.f32 %v1340, %v1339
        %v1342 = vmul.f32 0.5, %v1341
        %v1343 = vsub.f32 1.5, %v1342
        %v1344 = vmul.f32 %v1339, %v1343
        %vm1345 = vweird.f32 %v1314
        %vm1346 = vweird.f32 %v1339
        %vm1347 = vmor %vm1345, %vm1346
        %v1348 = vsel %vm1347, %v1339, %v1344
        %v1349 = vrsqrt.pop %v1315
        %v1350 = vmul.f32 %v1349, %v1315
        %v1351 = vmul.f32 %v1350, %v1349
        %v1352 = vmul.f32 0.5, %v1351
        %v1353 = vsub.f32 1.5, %v1352
        %v1354 = vmul.f32 %v1349, %v1353
        %vm1355 = vweird.f32 %v1315
        %vm1356 = vweird.f32 %v1349
        %vm1357 = vmor %vm1355, %vm1356
        %v1358 = vsel %vm1357, %v1349, %v1354
        %v1359 = vrsqrt.pop %v1316
        %v1360 = vmul.f32 %v1359, %v1316
        %v1361 = vmul.f32 %v1360, %v1359
        %v1362 = vmul.f32 0.5, %v1361
        %v1363 = vsub.f32 1.5, %v1362
        %v1364 = vmul.f32 %v1359, %v1363
        %vm1365 = vweird.f32 %v1316
        %vm1366 = vweird.f32 %v1359
        %vm1367 = vmor %vm1365, %vm1366
        %v1368 = vsel %vm1367, %v1359, %v1364
        %v1369 = vrsqrt.pop %v1317
        %v1370 = vmul.f32 %v1369, %v1317
        %v1371 = vmul.f32 %v1370, %v1369
        %v1372 = vmul.f32 0.5, %v1371
        %v1373 = vsub.f32 1.5, %v1372
        %v1374 = vmul.f32 %v1369, %v1373
        %vm1375 = vweird.f32 %v1317
        %vm1376 = vweird.f32 %v1369
        %vm1377 = vmor %vm1375, %vm1376
        %v1378 = vsel %vm1377, %v1369, %v1374
        %v1379 = vrsqrt.pop %v1318
        %v1380 = vmul.f32 %v1379, %v1318
        %v1381 = vmul.f32 %v1380, %v1379
        %v1382 = vmul.f32 0.5, %v1381
        %v1383 = vsub.f32 1.5, %v1382
        %v1384 = vmul.f32 %v1379, %v1383
        %vm1385 = vweird.f32 %v1318
        %vm1386 = vweird.f32 %v1379
        %vm1387 = vmor %vm1385, %vm1386
        %v1388 = vsel %vm1387, %v1379, %v1384
        %v1389 = vrsqrt.pop %v1319
        %v1390 = vmul.f32 %v1389, %v1319
        %v1391 = vmul.f32 %v1390, %v1389
        %v1392 = vmul.f32 0.5, %v1391
        %v1393 = vsub.f32 1.5, %v1392
        %v1394 = vmul.f32 %v1389, %v1393
        %vm1395 = vweird.f32 %v1319
        %vm1396 = vweird.f32 %v1389
        %vm1397 = vmor %vm1395, %vm1396
        %v1398 = vsel %vm1397, %v1389, %v1394
        %v1399 = vrsqrt.pop %v1320
        %v1400 = vmul.f32 %v1399, %v1320
        %v1401 = vmul.f32 %v1400, %v1399
        %v1402 = vmul.f32 0.5, %v1401
        %v1403 = vsub.f32 1.5, %v1402
        %v1404 = vmul.f32 %v1399, %v1403
        %vm1405 = vweird.f32 %v1320
        %vm1406 = vweird.f32 %v1399
        %vm1407 = vmor %vm1405, %vm1406
        %v1408 = vsel %vm1407, %v1399, %v1404
        %v1409 = vrsqrt.pop %v1321
        %v1410 = vmul.f32 %v1409, %v1321
        %v1411 = vmul.f32 %v1410, %v1409
        %v1412 = vmul.f32 0.5, %v1411
        %v1413 = vsub.f32 1.5, %v1412
        %v1414 = vmul.f32 %v1409, %v1413
        %vm1415 = vweird.f32 %v1321
        %vm1416 = vweird.f32 %v1409
        %vm1417 = vmor %vm1415, %vm1416
        %v1418 = vsel %vm1417, %v1409, %v1414
        %v1419 = vrsqrt.pop %v1322
        %v1420 = vmul.f32 %v1419, %v1322
        %v1421 = vmul.f32 %v1420, %v1419
        %v1422 = vmul.f32 0.5, %v1421
        %v1423 = vsub.f32 1.5, %v1422
        %v1424 = vmul.f32 %v1419, %v1423
        %vm1425 = vweird.f32 %v1322
        %vm1426 = vweird.f32 %v1419
        %vm1427 = vmor %vm1425, %vm1426
        %v1428 = vsel %vm1427, %v1419, %v1424
        %v1429 = vrsqrt.pop %v1323
        %v1430 = vmul.f32 %v1429, %v1323
        %v1431 = vmul.f32 %v1430, %v1429
        %v1432 = vmul.f32 0.5, %v1431
        %v1433 = vsub.f32 1.5, %v1432
        %v1434 = vmul.f32 %v1429, %v1433
        %vm1435 = vweird.f32 %v1323
        %vm1436 = vweird.f32 %v1429
        %vm1437 = vmor %vm1435, %vm1436
        %v1438 = vsel %vm1437, %v1429, %v1434
        %v1439 = vrsqrt.pop %v1324
        %v1440 = vmul.f32 %v1439, %v1324
        %v1441 = vmul.f32 %v1440, %v1439
        %v1442 = vmul.f32 0.5, %v1441
        %v1443 = vsub.f32 1.5, %v1442
        %v1444 = vmul.f32 %v1439, %v1443
        %vm1445 = vweird.f32 %v1324
        %vm1446 = vweird.f32 %v1439
        %vm1447 = vmor %vm1445, %vm1446
        %v1448 = vsel %vm1447, %v1439, %v1444
        %v1449 = vrsqrt.pop %v1325
        %v1450 = vmul.f32 %v1449, %v1325
        %v1451 = vmul.f32 %v1450, %v1449
        %v1452 = vmul.f32 0.5, %v1451
        %v1453 = vsub.f32 1.5, %v1452
        %v1454 = vmul.f32 %v1449, %v1453
        %vm1455 = vweird.f32 %v1325
        %vm1456 = vweird.f32 %v1449
        %vm1457 = vmor %vm1455, %vm1456
        %v1458 = vsel %vm1457, %v1449, %v1454
        %v1459 = vrsqrt.pop %v1326
        %v1460 = vmul.f32 %v1459, %v1326
        %v1461 = vmul.f32 %v1460, %v1459
        %v1462 = vmul.f32 0.5, %v1461
        %v1463 = vsub.f32 1.5, %v1462
        %v1464 = vmul.f32 %v1459, %v1463
        %vm1465 = vweird.f32 %v1326
        %vm1466 = vweird.f32 %v1459
        %vm1467 = vmor %vm1465, %vm1466
        %v1468 = vsel %vm1467, %v1459, %v1464
        %v1469 = vrsqrt.pop %v1327
        %v1470 = vmul.f32 %v1469, %v1327
        %v1471 = vmul.f32 %v1470, %v1469
        %v1472 = vmul.f32 0.5, %v1471
        %v1473 = vsub.f32 1.5, %v1472
        %v1474 = vmul.f32 %v1469, %v1473
        %vm1475 = vweird.f32 %v1327
        %vm1476 = vweird.f32 %v1469
        %vm1477 = vmor %vm1475, %vm1476
        %v1478 = vsel %vm1477, %v1469, %v1474
        %v1479 = vrsqrt.pop %v1328
        %v1480 = vmul.f32 %v1479, %v1328
        %v1481 = vmul.f32 %v1480, %v1479
        %v1482 = vmul.f32 0.5, %v1481
        %v1483 = vsub.f32 1.5, %v1482
        %v1484 = vmul.f32 %v1479, %v1483
        %vm1485 = vweird.f32 %v1328
        %vm1486 = vweird.f32 %v1479
        %vm1487 = vmor %vm1485, %vm1486
        %v1488 = vsel %vm1487, %v1479, %v1484
        %v1489 = vmul.f32 %v1297, %v1338
        %v1490 = vmul.f32 %v1298, %v1348
        %v1491 = vmul.f32 %v1299, %v1358
        %v1492 = vmul.f32 %v1300, %v1368
        %v1493 = vmul.f32 %v1301, %v1378
        %v1494 = vmul.f32 %v1302, %v1388
        %v1495 = vmul.f32 %v1303, %v1398
        %v1496 = vmul.f32 %v1304, %v1408
        %v1497 = vmul.f32 %v1305, %v1418
        %v1498 = vmul.f32 %v1306, %v1428
        %v1499 = vmul.f32 %v1307, %v1438
        %v1500 = vmul.f32 %v1308, %v1448
        %v1501 = vmul.f32 %v1309, %v1458
        %v1502 = vmul.f32 %v1310, %v1468
        %v1503 = vmul.f32 %v1311, %v1478
        %v1504 = vmul.f32 %v1312, %v1488
        %v1506 = vperm.slane %v1151, 0
        %v1508 = vmul.f32 %v1489, %v1506
        %v1509 = vmul.f32 %v1490, %v1506
        %v1510 = vmul.f32 %v1491, %v1506
        %v1511 = vmul.f32 %v1492, %v1506
        %v1512 = vmul.f32 %v1493, %v1506
        %v1513 = vmul.f32 %v1494, %v1506
        %v1514 = vmul.f32 %v1495, %v1506
        %v1515 = vmul.f32 %v1496, %v1506
        %v1516 = vmul.f32 %v1497, %v1506
        %v1517 = vmul.f32 %v1498, %v1506
        %v1518 = vmul.f32 %v1499, %v1506
        %v1519 = vmul.f32 %v1500, %v1506
        %v1520 = vmul.f32 %v1501, %v1506
        %v1521 = vmul.f32 %v1502, %v1506
        %v1522 = vmul.f32 %v1503, %v1506
        %v1523 = vmul.f32 %v1504, %v1506
        %v1525 = vperm.slane %v1152, 0
        %v1527 = vadd.f32 %v1508, %v1525
        %v1528 = vadd.f32 %v1509, %v1525
        %v1529 = vadd.f32 %v1510, %v1525
        %v1530 = vadd.f32 %v1511, %v1525
        %v1531 = vadd.f32 %v1512, %v1525
        %v1532 = vadd.f32 %v1513, %v1525
        %v1533 = vadd.f32 %v1514, %v1525
        %v1534 = vadd.f32 %v1515, %v1525
        %v1535 = vadd.f32 %v1516, %v1525
        %v1536 = vadd.f32 %v1517, %v1525
        %v1537 = vadd.f32 %v1518, %v1525
        %v1538 = vadd.f32 %v1519, %v1525
        %v1539 = vadd.f32 %v1520, %v1525
        %v1540 = vadd.f32 %v1521, %v1525
        %v1541 = vadd.f32 %v1522, %v1525
        %v1542 = vadd.f32 %v1523, %v1525
        %v1543 = vmax.f32 %v1527, 0.0
        %v1544 = vmax.f32 %v1528, 0.0
        %v1545 = vmax.f32 %v1529, 0.0
        %v1546 = vmax.f32 %v1530, 0.0
        %v1547 = vmax.f32 %v1531, 0.0
        %v1548 = vmax.f32 %v1532, 0.0
        %v1549 = vmax.f32 %v1533, 0.0
        %v1550 = vmax.f32 %v1534, 0.0
        %v1551 = vmax.f32 %v1535, 0.0
        %v1552 = vmax.f32 %v1536, 0.0
        %v1553 = vmax.f32 %v1537, 0.0
        %v1554 = vmax.f32 %v1538, 0.0
        %v1555 = vmax.f32 %v1539, 0.0
        %v1556 = vmax.f32 %v1540, 0.0
        %v1557 = vmax.f32 %v1541, 0.0
        %v1558 = vmax.f32 %v1542, 0.0
        %v1559 = vld [vmem:[#allocation8] sm:$0xff]
        %v1560 = vld [vmem:[#allocation8 + $0x8] sm:$0xff]
        %v1561 = vld [vmem:[#allocation8 + $0x10] sm:$0xff]
        %v1562 = vld [vmem:[#allocation8 + $0x18] sm:$0xff]
        %v1563 = vld [vmem:[#allocation8 + $0x20] sm:$0xff]
        %v1564 = vld [vmem:[#allocation8 + $0x28] sm:$0xff]
        %v1565 = vld [vmem:[#allocation8 + $0x30] sm:$0xff]
        %v1566 = vld [vmem:[#allocation8 + $0x38] sm:$0xff]
        %v1567 = vld [vmem:[#allocation8 + $0x40] sm:$0xff]
        %v1568 = vld [vmem:[#allocation8 + $0x48] sm:$0xff]
        %v1569 = vld [vmem:[#allocation8 + $0x50] sm:$0xff]
        %v1570 = vld [vmem:[#allocation8 + $0x58] sm:$0xff]
        %v1571 = vld [vmem:[#allocation8 + $0x60] sm:$0xff]
        %v1572 = vld [vmem:[#allocation8 + $0x68] sm:$0xff]
        %v1573 = vld [vmem:[#allocation8 + $0x70] sm:$0xff]
        %v1574 = vld [vmem:[#allocation8 + $0x78] sm:$0xff]
        %v1575 = vld [vmem:[%s6] sm:$0x1]
        %v1577 = vperm.slane %v1575, 0
        %1579 = vmatpush.msra.mxu0 %v1574
        %1580 = vmatpush.msra.mxu0 %v1573
        %1581 = vmatpush.msra.mxu0 %v1572
        %1582 = vmatpush.msra.mxu0 %v1571
        %1583 = vmatpush.msra.mxu0 %v1570
        %1584 = vmatpush.msra.mxu0 %v1569
        %1585 = vmatpush.msra.mxu0 %v1568
        %1586 = vmatpush.msra.mxu0 %v1567
        %1587 = vmatpush.msra.mxu0 %v1566
        %1588 = vmatpush.msra.mxu0 %v1565
        %1589 = vmatpush.msra.mxu0 %v1564
        %1590 = vmatpush.msra.mxu0 %v1563
        %1591 = vmatpush.msra.mxu0 %v1562
        %1592 = vmatpush.msra.mxu0 %v1561
        %1593 = vmatpush.msra.mxu0 %v1560
        %1594 = vmatpush.msra.mxu0 %v1559
        %1595 = vmatmul.f32.gmra.mxu0 %v1543
        %v1596 = vpop.f32.mrf.mxu0
        %v1597 = vadd.f32 %v1577, %v1596
        %1598 = vmatmul.f32.gmra.mxu0 %v1544
        %v1599 = vpop.f32.mrf.mxu0
        %v1600 = vadd.f32 %v1577, %v1599
        %1601 = vmatmul.f32.gmra.mxu0 %v1545
        %v1602 = vpop.f32.mrf.mxu0
        %v1603 = vadd.f32 %v1577, %v1602
        %1604 = vmatmul.f32.gmra.mxu0 %v1546
        %v1605 = vpop.f32.mrf.mxu0
        %v1606 = vadd.f32 %v1577, %v1605
        %1607 = vmatmul.f32.gmra.mxu0 %v1547
        %v1608 = vpop.f32.mrf.mxu0
        %v1609 = vadd.f32 %v1577, %v1608
        %1610 = vmatmul.f32.gmra.mxu0 %v1548
        %v1611 = vpop.f32.mrf.mxu0
        %v1612 = vadd.f32 %v1577, %v1611
        %1613 = vmatmul.f32.gmra.mxu0 %v1549
        %v1614 = vpop.f32.mrf.mxu0
        %v1615 = vadd.f32 %v1577, %v1614
        %1616 = vmatmul.f32.gmra.mxu0 %v1550
        %v1617 = vpop.f32.mrf.mxu0
        %v1618 = vadd.f32 %v1577, %v1617
        %1619 = vmatmul.f32.gmra.mxu0 %v1551
        %v1620 = vpop.f32.mrf.mxu0
        %v1621 = vadd.f32 %v1577, %v1620
        %1622 = vmatmul.f32.gmra.mxu0 %v1552
        %v1623 = vpop.f32.mrf.mxu0
        %v1624 = vadd.f32 %v1577, %v1623
        %1625 = vmatmul.f32.gmra.mxu0 %v1553
        %v1626 = vpop.f32.mrf.mxu0
        %v1627 = vadd.f32 %v1577, %v1626
        %1628 = vmatmul.f32.gmra.mxu0 %v1554
        %v1629 = vpop.f32.mrf.mxu0
        %v1630 = vadd.f32 %v1577, %v1629
        %1631 = vmatmul.f32.gmra.mxu0 %v1555
        %v1632 = vpop.f32.mrf.mxu0
        %v1633 = vadd.f32 %v1577, %v1632
        %1634 = vmatmul.f32.gmra.mxu0 %v1556
        %v1635 = vpop.f32.mrf.mxu0
        %v1636 = vadd.f32 %v1577, %v1635
        %1637 = vmatmul.f32.gmra.mxu0 %v1557
        %v1638 = vpop.f32.mrf.mxu0
        %v1639 = vadd.f32 %v1577, %v1638
        %1640 = vmatmul.f32.gmra.mxu0 %v1558
        %v1641 = vpop.f32.mrf.mxu0
        %v1642 = vadd.f32 %v1577, %v1641
        %1643 = vdwg.mxu0
        %v1644 = vadd.f32 %v1597, 1.0
        %v1645 = vadd.f32 %v1600, 1.0
        %v1646 = vadd.f32 %v1603, 1.0
        %v1647 = vadd.f32 %v1606, 1.0
        %v1648 = vadd.f32 %v1609, 1.0
        %v1649 = vadd.f32 %v1612, 1.0
        %v1650 = vadd.f32 %v1615, 1.0
        %v1651 = vadd.f32 %v1618, 1.0
        %v1652 = vadd.f32 %v1621, 1.0
        %v1653 = vadd.f32 %v1624, 1.0
        %v1654 = vadd.f32 %v1627, 1.0
        %v1655 = vadd.f32 %v1630, 1.0
        %v1656 = vadd.f32 %v1633, 1.0
        %v1657 = vadd.f32 %v1636, 1.0
        %v1658 = vadd.f32 %v1639, 1.0
        %v1659 = vadd.f32 %v1642, 1.0
        %v1660 = vmax.f32 %v1644, 0.05
        %v1661 = vmax.f32 %v1645, 0.05
        %v1662 = vmax.f32 %v1646, 0.05
        %v1663 = vmax.f32 %v1647, 0.05
        %v1664 = vmax.f32 %v1648, 0.05
        %v1665 = vmax.f32 %v1649, 0.05
        %v1666 = vmax.f32 %v1650, 0.05
        %v1667 = vmax.f32 %v1651, 0.05
        %v1668 = vmax.f32 %v1652, 0.05
        %v1669 = vmax.f32 %v1653, 0.05
        %v1670 = vmax.f32 %v1654, 0.05
        %v1671 = vmax.f32 %v1655, 0.05
        %v1672 = vmax.f32 %v1656, 0.05
        %v1673 = vmax.f32 %v1657, 0.05
        %v1674 = vmax.f32 %v1658, 0.05
        %v1675 = vmax.f32 %v1659, 0.05
        %v1676 = vmin.f32 %v1660, 1e+09
        %v1677 = vmin.f32 %v1661, 1e+09
        %v1678 = vmin.f32 %v1662, 1e+09
        %v1679 = vmin.f32 %v1663, 1e+09
        %v1680 = vmin.f32 %v1664, 1e+09
        %v1681 = vmin.f32 %v1665, 1e+09
        %v1682 = vmin.f32 %v1666, 1e+09
        %v1683 = vmin.f32 %v1667, 1e+09
        %v1684 = vmin.f32 %v1668, 1e+09
        %v1685 = vmin.f32 %v1669, 1e+09
        %v1686 = vmin.f32 %v1670, 1e+09
        %v1687 = vmin.f32 %v1671, 1e+09
        %v1688 = vmin.f32 %v1672, 1e+09
        %v1689 = vmin.f32 %v1673, 1e+09
        %v1690 = vmin.f32 %v1674, 1e+09
        %v1691 = vmin.f32 %v1675, 1e+09
        %1692 = vst [vmem:[%s457] sm:$0xff] %v1676
        %1693 = vst [vmem:[%s457 + $0x8] sm:$0xff] %v1677
        %1694 = vst [vmem:[%s457 + $0x10] sm:$0xff] %v1678
        %1695 = vst [vmem:[%s457 + $0x18] sm:$0xff] %v1679
        %1696 = vst [vmem:[%s457 + $0x20] sm:$0xff] %v1680
        %1697 = vst [vmem:[%s457 + $0x28] sm:$0xff] %v1681
        %1698 = vst [vmem:[%s457 + $0x30] sm:$0xff] %v1682
        %1699 = vst [vmem:[%s457 + $0x38] sm:$0xff] %v1683
        %1700 = vst [vmem:[%s457 + $0x40] sm:$0xff] %v1684
        %1701 = vst [vmem:[%s457 + $0x48] sm:$0xff] %v1685
        %1702 = vst [vmem:[%s457 + $0x50] sm:$0xff] %v1686
        %1703 = vst [vmem:[%s457 + $0x58] sm:$0xff] %v1687
        %1704 = vst [vmem:[%s457 + $0x60] sm:$0xff] %v1688
        %1705 = vst [vmem:[%s457 + $0x68] sm:$0xff] %v1689
        %1706 = vst [vmem:[%s457 + $0x70] sm:$0xff] %v1690
        %1707 = vst [vmem:[%s457 + $0x78] sm:$0xff] %v1691
        %s1708 = sand.u32 %s274, 1
        %s1709 = scalar_lea.sflag [#allocation4], %s1708
        %s1710 = sand.u32 %s274, 1
        %s1711 = smul.addr %s1710, 128
        %s1712 = scalar_lea.vmem [#allocation10], %s1711
        // Predicated region
        $region81: #{tpu_custom_call.1} parent=63 // pred_check
          %p1713 = pneg %p284
        $region82: #{tpu_custom_call.1} parent=63 // pred_check_branch
          %1715 = sbr.rel (%p1713) target = $region84
        $region83: #{tpu_custom_call.1} parent=63 // pred_region
          %s1716 = smul.u32 16, %s30
          %1718 = vsyncadd %s1709, 0
          %s1719 = smul.addr %s1716, 8
          %s1720 = scalar_lea.hbm %s11, %s1719
          %s1721 = sshll.u32 %s1712, 4
          %s1722 = int_to_ptr.vmem [resolvable:$true] %s1721
          %s1723 = sshll.u32 %s1720, 4
          %s1724 = int_to_ptr.hbm [resolvable:$true] %s1723
          %1729 = dma.vmem_to_hbm [thread:$0]  %s1722, 2048, %s1724, %s1709, 128, 128, 8
        $region84: #{tpu_custom_call.1} parent=63 // pred_fallthru
          _
      $region64: #{tpu_custom_call.1} parent=5 // pred_fallthru
        _
      %p1730 = scmp.le.s32.totalorder 2, %s25
      // Predicated region
      $region85: #{tpu_custom_call.1} parent=5 // pred_check
        %p1731 = pneg %p1730
      $region86: #{tpu_custom_call.1} parent=5 // pred_check_branch
        %1733 = sbr.rel (%p1731) target = $region88
      $region87: #{tpu_custom_call.1} parent=5 // pred_region
        %s1734 = ssub.s32 %s25, 2
        // Predicated region
        $region89: #{tpu_custom_call.1} parent=87 // pred_check
          %p1735 = pneg %p290
        $region90: #{tpu_custom_call.1} parent=87 // pred_check_branch
          %1737 = sbr.rel (%p1735) target = $region92
        $region91: #{tpu_custom_call.1} parent=87 // pred_region
          %s1738 = sand.u32 %s275, 1
          %s1739 = scalar_lea.sflag [#allocation4], %s1738
          %s1740 = sand.u32 %s275, 1
          %s1741 = smul.addr %s1740, 128
          %s1742 = scalar_lea.vmem [#allocation10], %s1741
          %1744 = dma.done %s1739, 2048
        $region92: #{tpu_custom_call.1} parent=87 // pred_fallthru
          _
      $region88: #{tpu_custom_call.1} parent=5 // pred_fallthru
        _
    $region6: #{tpu_custom_call.1} parent=1 // loop_footer
      %s29 = sadd.s32 1, %s25
    $region7: #{tpu_custom_call.1} parent=1 // loop_footer_branch
      %24 = sbr.rel target = $region3
    $region8: #{tpu_custom_call.1} parent=1 // loop_exit
      _
    %1745 = vsyncpa [#allocation3], 1
    %s1746 = scalar_lea.sflag [#allocation3], 1
    %1747 = vsyncpa %s1746, 1
    %1748 = vsyncpa [#allocation6], 1
    %1749 = vsyncpa [#allocation9], 1
    %1750 = vsyncpa [#allocation4], 1
    %s1751 = scalar_lea.sflag [#allocation4], 1
    %1752 = vsyncpa %s1751, 1

</llo_original>
